<compile_context>
chip_gen: v7x
topology: tpu7x:2x2x1
jax: 0.10.0
libtpu: 0.0.40
codegen_flags: <defaults>
</compile_context>

<pallas_src>
import math
from functools import partial

import jax
import jax.numpy as jnp
import numpy as np
from jax import lax
from jax.experimental import pallas as pl
from jax.experimental.pallas import tpu as pltpu

# ---------------- config (small, consistent with the module) ----------------
BATCH = 2
SEQ = 8
HIDDEN = 32
NUM_HEADS = 4
HEAD_DIM = HIDDEN // NUM_HEADS
LN_EPS = 1e-12
STEP = 3  # "liquid" computation step


# ------------------------------- Pallas kernel ------------------------------
def _attention_body(x_ref, mask_ref, qkv_p_ref, wo_p_ref, vec_ref, step_ref,
                    out_ref, ctx_ref, *, batch, seq, num_heads, head_dim, eps):
    hidden = num_heads * head_dim

    step = step_ref[0]        # float(step)
    sin_step = step_ref[1]    # sin(step * 0.01), precomputed scalar for the bias update

    x = x_ref[...]                                   # (B*S, H)  (read before aliased write)

    # --- LayerNorm (biased variance, matches torch.nn.LayerNorm) ---
    mean = jnp.mean(x, axis=-1, keepdims=True)
    var = jnp.mean((x - mean) ** 2, axis=-1, keepdims=True)
    gamma = vec_ref[0:1, 0:hidden]                   # (1, H)
    beta = vec_ref[1:2, 0:hidden]                    # (1, H)
    h = (x - mean) * lax.rsqrt(var + eps) * gamma + beta

    # --- liquid dynamic-weight rebuild, in-kernel (VPU + EUP, hides under DMA) ---
    # wqkv columns are [Q | K | V] with 1/sqrt(head_dim) already folded into the
    # Q base & scale planes by the step-independent prepack.
    wqkv = qkv_p_ref[0] + qkv_p_ref[1] * jnp.sin(step * qkv_p_ref[2] + qkv_p_ref[3])  # (H, 3H)
    wo_t = wo_p_ref[0] + wo_p_ref[1] * jnp.sin(step * wo_p_ref[2] + wo_p_ref[3])      # (H, H)
    bqkv = vec_ref[2:3, :] + vec_ref[3:4, :] * sin_step                               # (1, 3H)
    bo = vec_ref[4:5, 0:hidden] + vec_ref[5:6, 0:hidden] * sin_step                    # (1, H)

    # --- fused Q|K|V projection: one (B*S, H) @ (H, 3H) matmul ---
    qkv = jnp.dot(h, wqkv, preferred_element_type=jnp.float32) + bqkv                  # (B*S, 3H)

    # --- attention: statically unrolled over batch (per-batch mask) & heads ---
    for b in range(batch):
        r0 = b * seq
        qkv_b = qkv[r0:r0 + seq, :]                                    # hoisted per-batch slab
        mask_b = mask_ref[b] if mask_ref is not None else None         # (S, S) additive
        for hd in range(num_heads):
            c0 = hd * head_dim
            qh = qkv_b[:, c0:c0 + head_dim]                            # (S, dh)
            kh = qkv_b[:, hidden + c0:hidden + c0 + head_dim]          # (S, dh)
            vh = qkv_b[:, 2 * hidden + c0:2 * hidden + c0 + head_dim]  # (S, dh)

            # q @ k^T as a contraction over the last dims (no materialized transpose).
            scores = lax.dot_general(qh, kh, (((1,), (1,)), ((), ())),
                                     preferred_element_type=jnp.float32)   # (S, S)
            if mask_b is not None:
                scores = scores + mask_b

            m = jnp.max(scores, axis=-1, keepdims=True)
            p = jnp.exp(scores - m)
            probs = p / jnp.sum(p, axis=-1, keepdims=True)   # exact reciprocal (review)
            # attention dropout: inference-mode identity

            ctx_h = jnp.dot(probs, vh, preferred_element_type=jnp.float32)  # (S, dh)
            # assemble per-head context into the (B*S, H) scratch
            ctx_ref[r0:r0 + seq, c0:c0 + head_dim] = ctx_h

    # --- one fused output projection for all rows + bias + residual, single store ---
    out = jnp.dot(ctx_ref[...], wo_t, preferred_element_type=jnp.float32) + bo + x
    out_ref[...] = out.astype(out_ref.dtype)


def _kernel_with_mask(x_ref, mask_ref, qkv_p_ref, wo_p_ref, vec_ref, step_ref,
                      out_ref, ctx_ref, *, batch, seq, num_heads, head_dim, eps):
    _attention_body(x_ref, mask_ref, qkv_p_ref, wo_p_ref, vec_ref, step_ref,
                    out_ref, ctx_ref, batch=batch, seq=seq, num_heads=num_heads,
                    head_dim=head_dim, eps=eps)


def _kernel_no_mask(x_ref, qkv_p_ref, wo_p_ref, vec_ref, step_ref,
                    out_ref, ctx_ref, *, batch, seq, num_heads, head_dim, eps):
    _attention_body(x_ref, None, qkv_p_ref, wo_p_ref, vec_ref, step_ref,
                    out_ref, ctx_ref, batch=batch, seq=seq, num_heads=num_heads,
                    head_dim=head_dim, eps=eps)


# ----------------------- step-independent parameter prepack ------------------
def pack_liquid_params(params, *, num_heads=NUM_HEADS):
    """Pack the liquid parameters once into the fused kernel layout.

    Returns three slabs (all f32):
      qkv: (4, H, 3H)  base / dyn-scale / freq / phase in fused [Q|K|V] (in,out) layout,
                       1/sqrt(head_dim) folded into the Q base & scale columns.
      wo : (4, H, H)   same four planes for wo^T.
      vec: (8, 3H)     rows: gamma, beta, bqkv_base, bqkv_scale, bo_base, bo_scale, 0, 0.
    """
    q, k, v, o = params["query"], params["key"], params["value"], params["output"]
    hidden = params["ln_gamma"].shape[0]
    head_dim = hidden // num_heads
    inv = 1.0 / math.sqrt(head_dim)

    def plane(name, q_scale=1.0):
        return jnp.concatenate([q[name].T * q_scale, k[name].T, v[name].T], axis=1)  # (H, 3H)

    qkv_params = jnp.stack([
        plane("weight", inv),
        plane("dynamic_weight_scale", inv),
        plane("time_freq"),
        plane("time_phase"),
    ]).astype(jnp.float32)                                                            # (4, H, 3H)

    wo_params = jnp.stack([
        o["weight"].T, o["dynamic_weight_scale"].T, o["time_freq"].T, o["time_phase"].T,
    ]).astype(jnp.float32)                                                            # (4, H, H)

    vec = jnp.zeros((8, 3 * hidden), jnp.float32)
    vec = vec.at[0, :hidden].set(params["ln_gamma"])
    vec = vec.at[1, :hidden].set(params["ln_beta"])
    vec = vec.at[2, :].set(jnp.concatenate([q["bias"] * inv, k["bias"], v["bias"]]))
    vec = vec.at[3, :].set(jnp.concatenate([q["dynamic_bias_scale"] * inv,
                                            k["dynamic_bias_scale"],
                                            v["dynamic_bias_scale"]]))
    vec = vec.at[4, :hidden].set(o["bias"])
    vec = vec.at[5, :hidden].set(o["dynamic_bias_scale"])

    return {"qkv": qkv_params, "wo": wo_params, "vec": vec}


# ------------------------------ JAX wrapper ---------------------------------
def liquid_attention_forward(x, attention_mask, packed, step):
    B, S, H = x.shape
    assert H == HIDDEN
    x_flat = x.reshape(B * S, H).astype(jnp.float32)

    # step is a Python int in the module API -> scalars computed host-side for free.
    step_arr = jnp.asarray([float(step), math.sin(float(step) * 0.01)], jnp.float32)

    has_mask = attention_mask is not None
    kernel_fn = _kernel_with_mask if has_mask else _kernel_no_mask
    kernel = partial(kernel_fn, batch=B, seq=S, num_heads=NUM_HEADS,
                     head_dim=HEAD_DIM, eps=LN_EPS)

    vmem = pl.BlockSpec(memory_space=pltpu.MemorySpace.VMEM)
    smem = pl.BlockSpec(memory_space=pltpu.MemorySpace.SMEM)

    inputs = [x_flat]
    specs = [vmem]
    if has_mask:
        inputs.append(attention_mask.astype(jnp.float32))   # (B, S, S) additive
        specs.append(vmem)
    inputs += [packed["qkv"], packed["wo"], packed["vec"], step_arr]
    specs += [vmem, vmem, vmem, smem]

    out_flat = pl.pallas_call(
        kernel,
        out_shape=jax.ShapeDtypeStruct((B * S, H), jnp.float32),
        in_specs=specs,
        out_specs=vmem,
        scratch_shapes=[pltpu.VMEM((B * S, H), jnp.float32)],   # ctx assembly buffer
        input_output_aliases={0: 0},                            # output reuses x_flat buffer
    )(*inputs)

    return out_flat.reshape(B, S, H)


# ------------------------- pure-JAX reference (check) ------------------------
def _dynamic_weights(p, step):
    time_factor = jnp.sin(step * p["time_freq"] + p["time_phase"])
    w = p["weight"] + p["dynamic_weight_scale"] * time_factor          # (out, in)
    b = p["bias"] + p["dynamic_bias_scale"] * jnp.sin(step * 0.01)     # (out,)
    return w, b


def liquid_attention_reference(x, attention_mask, params, step):
    B, S, H = x.shape
    mean = x.mean(-1, keepdims=True)
    var = ((x - mean) ** 2).mean(-1, keepdims=True)
    h = (x - mean) / jnp.sqrt(var + LN_EPS)
    h = h * params["ln_gamma"] + params["ln_beta"]

    wq, bq = _dynamic_weights(params["query"], step)
    wk, bk = _dynamic_weights(params["key"], step)
    wv, bv = _dynamic_weights(params["value"], step)
    wo, bo = _dynamic_weights(params["output"], step)

    q = h @ wq.T + bq
    k = h @ wk.T + bk
    v = h @ wv.T + bv

    def split(t):
        return t.reshape(B, S, NUM_HEADS, HEAD_DIM).transpose(0, 2, 1, 3)

    qh, kh, vh = split(q), split(k), split(v)
    scores = qh @ kh.transpose(0, 1, 3, 2) / math.sqrt(HEAD_DIM)
    if attention_mask is not None:
        scores = scores + attention_mask[:, None, :, :]
    probs = jax.nn.softmax(scores, axis=-1)
    ctx = (probs @ vh).transpose(0, 2, 1, 3).reshape(B, S, H)
    return ctx @ wo.T + bo + x


# --------------------------- deterministic params ----------------------------
def make_params(key):
    keys = jax.random.split(key, 16)
    ki = iter(range(16))

    def liquid_fn_params(in_dim, out_dim):
        return {
            "weight": jax.random.normal(keys[next(ki)], (out_dim, in_dim), jnp.float32) * 0.02,
            "bias": jnp.zeros((out_dim,), jnp.float32),
            "dynamic_weight_scale": jnp.ones((out_dim, in_dim), jnp.float32) * 0.01,
            "dynamic_bias_scale": jnp.ones((out_dim,), jnp.float32) * 0.01,
            "time_freq": jax.random.normal(keys[next(ki)], (out_dim, in_dim), jnp.float32) * 0.01,
            "time_phase": jax.random.normal(keys[next(ki)], (out_dim, in_dim), jnp.float32) * 0.01,
        }

    return {
        "query": liquid_fn_params(HIDDEN, HIDDEN),
        "key": liquid_fn_params(HIDDEN, HIDDEN),
        "value": liquid_fn_params(HIDDEN, HIDDEN),
        "output": liquid_fn_params(HIDDEN, HIDDEN),
        "ln_gamma": jnp.ones((HIDDEN,), jnp.float32),
        "ln_beta": jnp.zeros((HIDDEN,), jnp.float32),
    }


# ----------------------------------- main ------------------------------------
if __name__ == "__main__":
    root = jax.random.PRNGKey(0)
    kx, kp = jax.random.split(root)

    x = jax.random.normal(kx, (BATCH, SEQ, HIDDEN), jnp.float32)

    # Additive attention mask: batch 1 masks out the last 2 key positions.
    mask = np.zeros((BATCH, SEQ, SEQ), np.float32)
    mask[1, :, -2:] = -1e9
    mask = jnp.asarray(mask)

    params = make_params(kp)
    packed = pack_liquid_params(params)       # step-independent prepack, done once

    # masked path
    out = jax.block_until_ready(liquid_attention_forward(x, mask, packed, STEP))
    ref = liquid_attention_reference(x, mask, params, STEP)
    np.testing.assert_allclose(np.asarray(out), np.asarray(ref), rtol=1e-4, atol=1e-4)

    # no-mask path (compile-time specialization: no zero-mask DMA / add)
    out_nm = jax.block_until_ready(liquid_attention_forward(x, None, packed, STEP))
    ref_nm = liquid_attention_reference(x, None, params, STEP)
    np.testing.assert_allclose(np.asarray(out_nm), np.asarray(ref_nm), rtol=1e-4, atol=1e-4)

    print("KERNEL_OK")
</pallas_src>

<mosaic_0001>
module attributes {stable_mosaic.version = 11 : i64} {
  func.func @_kernel_with_mask(%arg0: memref<16x32xf32, #tpu.memory_space<vmem>>, %arg1: memref<2x8x8xf32, #tpu.memory_space<vmem>>, %arg2: memref<4x32x96xf32, #tpu.memory_space<vmem>>, %arg3: memref<4x32x32xf32, #tpu.memory_space<vmem>>, %arg4: memref<8x96xf32, #tpu.memory_space<vmem>>, %arg5: memref<2xf32, #tpu.memory_space<smem>>, %arg6: memref<16x32xf32, #tpu.memory_space<vmem>>, %arg7: memref<16x32xf32, #tpu.memory_space<vmem>>) attributes {dimension_semantics = [], scalar_prefetch = 0 : i64, scratch_operands = 1 : i64, tpu.core_type = #tpu.core_type<tc>} {
    %c0 = arith.constant 0 : index
    %0 = memref.load %arg5[%c0] : memref<2xf32, #tpu.memory_space<smem>>
    %c1 = arith.constant 1 : index
    %1 = memref.load %arg5[%c1] : memref<2xf32, #tpu.memory_space<smem>>
    %c0_0 = arith.constant 0 : index
    %c0_1 = arith.constant 0 : index
    %2 = vector.load %arg0[%c0_0, %c0_1] : memref<16x32xf32, #tpu.memory_space<vmem>>, vector<16x32xf32>
    %cst = arith.constant dense<0.000000e+00> : vector<16xf32>
    %3 = vector.multi_reduction <add>, %2, %cst [1] : vector<16x32xf32> to vector<16xf32>
    %4 = vector.shape_cast %3 : vector<16xf32> to vector<16x1xf32>
    %cst_2 = arith.constant 3.200000e+01 : f32
    %5 = vector.broadcast %cst_2 : f32 to vector<16x1xf32>
    %6 = arith.divf %4, %5 : vector<16x1xf32>
    %7 = vector.broadcast %6 : vector<16x1xf32> to vector<16x32xf32>
    %8 = arith.subf %2, %7 : vector<16x32xf32>
    %9 = arith.mulf %8, %8 : vector<16x32xf32>
    %cst_3 = arith.constant dense<0.000000e+00> : vector<16xf32>
    %10 = vector.multi_reduction <add>, %9, %cst_3 [1] : vector<16x32xf32> to vector<16xf32>
    %11 = vector.shape_cast %10 : vector<16xf32> to vector<16x1xf32>
    %cst_4 = arith.constant 3.200000e+01 : f32
    %12 = vector.broadcast %cst_4 : f32 to vector<16x1xf32>
    %13 = arith.divf %11, %12 : vector<16x1xf32>
    %c0_5 = arith.constant 0 : index
    %c0_6 = arith.constant 0 : index
    %14 = vector.load %arg4[%c0_5, %c0_6] : memref<8x96xf32, #tpu.memory_space<vmem>>, vector<1x32xf32>
    %c1_7 = arith.constant 1 : index
    %c0_8 = arith.constant 0 : index
    %15 = vector.load %arg4[%c1_7, %c0_8] : memref<8x96xf32, #tpu.memory_space<vmem>>, vector<1x32xf32>
    %16 = vector.broadcast %6 : vector<16x1xf32> to vector<16x32xf32>
    %17 = arith.subf %2, %16 : vector<16x32xf32>
    %cst_9 = arith.constant 9.99999996E-13 : f32
    %18 = vector.broadcast %cst_9 : f32 to vector<16x1xf32>
    %19 = arith.addf %13, %18 : vector<16x1xf32>
    %20 = math.rsqrt %19 : vector<16x1xf32>
    %21 = vector.broadcast %20 : vector<16x1xf32> to vector<16x32xf32>
    %22 = arith.mulf %17, %21 : vector<16x32xf32>
    %23 = vector.broadcast %14 : vector<1x32xf32> to vector<16x32xf32>
    %24 = arith.mulf %22, %23 : vector<16x32xf32>
    %25 = vector.broadcast %15 : vector<1x32xf32> to vector<16x32xf32>
    %26 = arith.addf %24, %25 : vector<16x32xf32>
    %c0_10 = arith.constant 0 : index
    %c0_11 = arith.constant 0 : index
    %c0_12 = arith.constant 0 : index
    %27 = vector.load %arg2[%c0_10, %c0_11, %c0_12] : memref<4x32x96xf32, #tpu.memory_space<vmem>>, vector<1x32x96xf32>
    %28 = vector.shape_cast %27 : vector<1x32x96xf32> to vector<32x96xf32>
    %c1_13 = arith.constant 1 : index
    %c0_14 = arith.constant 0 : index
    %c0_15 = arith.constant 0 : index
    %29 = vector.load %arg2[%c1_13, %c0_14, %c0_15] : memref<4x32x96xf32, #tpu.memory_space<vmem>>, vector<1x32x96xf32>
    %30 = vector.shape_cast %29 : vector<1x32x96xf32> to vector<32x96xf32>
    %c2 = arith.constant 2 : index
    %c0_16 = arith.constant 0 : index
    %c0_17 = arith.constant 0 : index
    %31 = vector.load %arg2[%c2, %c0_16, %c0_17] : memref<4x32x96xf32, #tpu.memory_space<vmem>>, vector<1x32x96xf32>
    %32 = vector.shape_cast %31 : vector<1x32x96xf32> to vector<32x96xf32>
    %33 = vector.broadcast %0 : f32 to vector<32x96xf32>
    %34 = arith.mulf %33, %32 : vector<32x96xf32>
    %c3 = arith.constant 3 : index
    %c0_18 = arith.constant 0 : index
    %c0_19 = arith.constant 0 : index
    %35 = vector.load %arg2[%c3, %c0_18, %c0_19] : memref<4x32x96xf32, #tpu.memory_space<vmem>>, vector<1x32x96xf32>
    %36 = vector.shape_cast %35 : vector<1x32x96xf32> to vector<32x96xf32>
    %37 = arith.addf %34, %36 : vector<32x96xf32>
    %38 = math.sin %37 : vector<32x96xf32>
    %39 = arith.mulf %30, %38 : vector<32x96xf32>
    %40 = arith.addf %28, %39 : vector<32x96xf32>
    %c0_20 = arith.constant 0 : index
    %c0_21 = arith.constant 0 : index
    %c0_22 = arith.constant 0 : index
    %41 = vector.load %arg3[%c0_20, %c0_21, %c0_22] : memref<4x32x32xf32, #tpu.memory_space<vmem>>, vector<1x32x32xf32>
    %42 = vector.shape_cast %41 : vector<1x32x32xf32> to vector<32x32xf32>
    %c1_23 = arith.constant 1 : index
    %c0_24 = arith.constant 0 : index
    %c0_25 = arith.constant 0 : index
    %43 = vector.load %arg3[%c1_23, %c0_24, %c0_25] : memref<4x32x32xf32, #tpu.memory_space<vmem>>, vector<1x32x32xf32>
    %44 = vector.shape_cast %43 : vector<1x32x32xf32> to vector<32x32xf32>
    %c2_26 = arith.constant 2 : index
    %c0_27 = arith.constant 0 : index
    %c0_28 = arith.constant 0 : index
    %45 = vector.load %arg3[%c2_26, %c0_27, %c0_28] : memref<4x32x32xf32, #tpu.memory_space<vmem>>, vector<1x32x32xf32>
    %46 = vector.shape_cast %45 : vector<1x32x32xf32> to vector<32x32xf32>
    %47 = vector.broadcast %0 : f32 to vector<32x32xf32>
    %48 = arith.mulf %47, %46 : vector<32x32xf32>
    %c3_29 = arith.constant 3 : index
    %c0_30 = arith.constant 0 : index
    %c0_31 = arith.constant 0 : index
    %49 = vector.load %arg3[%c3_29, %c0_30, %c0_31] : memref<4x32x32xf32, #tpu.memory_space<vmem>>, vector<1x32x32xf32>
    %50 = vector.shape_cast %49 : vector<1x32x32xf32> to vector<32x32xf32>
    %51 = arith.addf %48, %50 : vector<32x32xf32>
    %52 = math.sin %51 : vector<32x32xf32>
    %53 = arith.mulf %44, %52 : vector<32x32xf32>
    %54 = arith.addf %42, %53 : vector<32x32xf32>
    %c2_32 = arith.constant 2 : index
    %c0_33 = arith.constant 0 : index
    %55 = vector.load %arg4[%c2_32, %c0_33] : memref<8x96xf32, #tpu.memory_space<vmem>>, vector<1x96xf32>
    %c3_34 = arith.constant 3 : index
    %c0_35 = arith.constant 0 : index
    %56 = vector.load %arg4[%c3_34, %c0_35] : memref<8x96xf32, #tpu.memory_space<vmem>>, vector<1x96xf32>
    %57 = vector.broadcast %1 : f32 to vector<1x96xf32>
    %58 = arith.mulf %56, %57 : vector<1x96xf32>
    %59 = arith.addf %55, %58 : vector<1x96xf32>
    %c4 = arith.constant 4 : index
    %c0_36 = arith.constant 0 : index
    %60 = vector.load %arg4[%c4, %c0_36] : memref<8x96xf32, #tpu.memory_space<vmem>>, vector<1x32xf32>
    %c5 = arith.constant 5 : index
    %c0_37 = arith.constant 0 : index
    %61 = vector.load %arg4[%c5, %c0_37] : memref<8x96xf32, #tpu.memory_space<vmem>>, vector<1x32xf32>
    %62 = vector.broadcast %1 : f32 to vector<1x32xf32>
    %63 = arith.mulf %61, %62 : vector<1x32xf32>
    %64 = arith.addf %60, %63 : vector<1x32xf32>
    %cst_38 = arith.constant dense<0.000000e+00> : vector<16x96xf32>
    %65 = tpu.matmul %26, %40, %cst_38 {dimension_numbers = #tpu.dot_dimension_numbers<[1], [0], [0], [1], [0, 0, 1, 1], [], []>} : vector<16x32xf32>, vector<32x96xf32>, vector<16x96xf32> -> vector<16x96xf32>
    %66 = vector.broadcast %59 : vector<1x96xf32> to vector<16x96xf32>
    %67 = arith.addf %65, %66 : vector<16x96xf32>
    %68 = vector.extract_strided_slice %67 {offsets = [0, 0], sizes = [8, 96], strides = [1, 1]} : vector<16x96xf32> to vector<8x96xf32>
    %c0_39 = arith.constant 0 : index
    %c0_40 = arith.constant 0 : index
    %c0_41 = arith.constant 0 : index
    %69 = vector.load %arg1[%c0_39, %c0_40, %c0_41] : memref<2x8x8xf32, #tpu.memory_space<vmem>>, vector<1x8x8xf32>
    %70 = vector.shape_cast %69 : vector<1x8x8xf32> to vector<8x8xf32>
    %71 = vector.extract_strided_slice %68 {offsets = [0, 0], sizes = [8, 8], strides = [1, 1]} : vector<8x96xf32> to vector<8x8xf32>
    %72 = vector.extract_strided_slice %68 {offsets = [0, 32], sizes = [8, 8], strides = [1, 1]} : vector<8x96xf32> to vector<8x8xf32>
    %73 = vector.extract_strided_slice %68 {offsets = [0, 64], sizes = [8, 8], strides = [1, 1]} : vector<8x96xf32> to vector<8x8xf32>
    %cst_42 = arith.constant dense<0.000000e+00> : vector<8x8xf32>
    %74 = tpu.matmul %71, %72, %cst_42 {dimension_numbers = #tpu.dot_dimension_numbers<[1], [1], [0], [0], [0, 0, 1, 0], [], []>} : vector<8x8xf32>, vector<8x8xf32>, vector<8x8xf32> -> vector<8x8xf32>
    %75 = arith.addf %74, %70 : vector<8x8xf32>
    %cst_43 = arith.constant dense<0xFF800000> : vector<8xf32>
    %76 = vector.multi_reduction <maximumf>, %75, %cst_43 [1] : vector<8x8xf32> to vector<8xf32>
    %77 = vector.shape_cast %76 : vector<8xf32> to vector<8x1xf32>
    %78 = vector.broadcast %77 : vector<8x1xf32> to vector<8x8xf32>
    %79 = arith.subf %75, %78 : vector<8x8xf32>
    %80 = math.exp %79 : vector<8x8xf32>
    %cst_44 = arith.constant dense<0.000000e+00> : vector<8xf32>
    %81 = vector.multi_reduction <add>, %80, %cst_44 [1] : vector<8x8xf32> to vector<8xf32>
    %82 = vector.shape_cast %81 : vector<8xf32> to vector<8x1xf32>
    %83 = vector.broadcast %82 : vector<8x1xf32> to vector<8x8xf32>
    %84 = arith.divf %80, %83 : vector<8x8xf32>
    %cst_45 = arith.constant dense<0.000000e+00> : vector<8x8xf32>
    %85 = tpu.matmul %84, %73, %cst_45 {dimension_numbers = #tpu.dot_dimension_numbers<[1], [0], [0], [1], [0, 0, 1, 1], [], []>} : vector<8x8xf32>, vector<8x8xf32>, vector<8x8xf32> -> vector<8x8xf32>
    %c0_46 = arith.constant 0 : index
    %c0_47 = arith.constant 0 : index
    %86 = vector.load %arg7[%c0_46, %c0_47] : memref<16x32xf32, #tpu.memory_space<vmem>>, vector<8x8xf32>
    tpu.vector_store %arg7[%c0_46, %c0_47], %85 {strides = array<i32>} : memref<16x32xf32, #tpu.memory_space<vmem>>, vector<8x8xf32>,
    %87 = vector.extract_strided_slice %68 {offsets = [0, 8], sizes = [8, 8], strides = [1, 1]} : vector<8x96xf32> to vector<8x8xf32>
    %88 = vector.extract_strided_slice %68 {offsets = [0, 40], sizes = [8, 8], strides = [1, 1]} : vector<8x96xf32> to vector<8x8xf32>
    %89 = vector.extract_strided_slice %68 {offsets = [0, 72], sizes = [8, 8], strides = [1, 1]} : vector<8x96xf32> to vector<8x8xf32>
    %cst_48 = arith.constant dense<0.000000e+00> : vector<8x8xf32>
    %90 = tpu.matmul %87, %88, %cst_48 {dimension_numbers = #tpu.dot_dimension_numbers<[1], [1], [0], [0], [0, 0, 1, 0], [], []>} : vector<8x8xf32>, vector<8x8xf32>, vector<8x8xf32> -> vector<8x8xf32>
    %91 = arith.addf %90, %70 : vector<8x8xf32>
    %cst_49 = arith.constant dense<0xFF800000> : vector<8xf32>
    %92 = vector.multi_reduction <maximumf>, %91, %cst_49 [1] : vector<8x8xf32> to vector<8xf32>
    %93 = vector.shape_cast %92 : vector<8xf32> to vector<8x1xf32>
    %94 = vector.broadcast %93 : vector<8x1xf32> to vector<8x8xf32>
    %95 = arith.subf %91, %94 : vector<8x8xf32>
    %96 = math.exp %95 : vector<8x8xf32>
    %cst_50 = arith.constant dense<0.000000e+00> : vector<8xf32>
    %97 = vector.multi_reduction <add>, %96, %cst_50 [1] : vector<8x8xf32> to vector<8xf32>
    %98 = vector.shape_cast %97 : vector<8xf32> to vector<8x1xf32>
    %99 = vector.broadcast %98 : vector<8x1xf32> to vector<8x8xf32>
    %100 = arith.divf %96, %99 : vector<8x8xf32>
    %cst_51 = arith.constant dense<0.000000e+00> : vector<8x8xf32>
    %101 = tpu.matmul %100, %89, %cst_51 {dimension_numbers = #tpu.dot_dimension_numbers<[1], [0], [0], [1], [0, 0, 1, 1], [], []>} : vector<8x8xf32>, vector<8x8xf32>, vector<8x8xf32> -> vector<8x8xf32>
    %c0_52 = arith.constant 0 : index
    %c8 = arith.constant 8 : index
    %102 = vector.load %arg7[%c0_52, %c8] : memref<16x32xf32, #tpu.memory_space<vmem>>, vector<8x8xf32>
    tpu.vector_store %arg7[%c0_52, %c8], %101 {strides = array<i32>} : memref<16x32xf32, #tpu.memory_space<vmem>>, vector<8x8xf32>,
    %103 = vector.extract_strided_slice %68 {offsets = [0, 16], sizes = [8, 8], strides = [1, 1]} : vector<8x96xf32> to vector<8x8xf32>
    %104 = vector.extract_strided_slice %68 {offsets = [0, 48], sizes = [8, 8], strides = [1, 1]} : vector<8x96xf32> to vector<8x8xf32>
    %105 = vector.extract_strided_slice %68 {offsets = [0, 80], sizes = [8, 8], strides = [1, 1]} : vector<8x96xf32> to vector<8x8xf32>
    %cst_53 = arith.constant dense<0.000000e+00> : vector<8x8xf32>
    %106 = tpu.matmul %103, %104, %cst_53 {dimension_numbers = #tpu.dot_dimension_numbers<[1], [1], [0], [0], [0, 0, 1, 0], [], []>} : vector<8x8xf32>, vector<8x8xf32>, vector<8x8xf32> -> vector<8x8xf32>
    %107 = arith.addf %106, %70 : vector<8x8xf32>
    %cst_54 = arith.constant dense<0xFF800000> : vector<8xf32>
    %108 = vector.multi_reduction <maximumf>, %107, %cst_54 [1] : vector<8x8xf32> to vector<8xf32>
    %109 = vector.shape_cast %108 : vector<8xf32> to vector<8x1xf32>
    %110 = vector.broadcast %109 : vector<8x1xf32> to vector<8x8xf32>
    %111 = arith.subf %107, %110 : vector<8x8xf32>
    %112 = math.exp %111 : vector<8x8xf32>
    %cst_55 = arith.constant dense<0.000000e+00> : vector<8xf32>
    %113 = vector.multi_reduction <add>, %112, %cst_55 [1] : vector<8x8xf32> to vector<8xf32>
    %114 = vector.shape_cast %113 : vector<8xf32> to vector<8x1xf32>
    %115 = vector.broadcast %114 : vector<8x1xf32> to vector<8x8xf32>
    %116 = arith.divf %112, %115 : vector<8x8xf32>
    %cst_56 = arith.constant dense<0.000000e+00> : vector<8x8xf32>
    %117 = tpu.matmul %116, %105, %cst_56 {dimension_numbers = #tpu.dot_dimension_numbers<[1], [0], [0], [1], [0, 0, 1, 1], [], []>} : vector<8x8xf32>, vector<8x8xf32>, vector<8x8xf32> -> vector<8x8xf32>
    %c0_57 = arith.constant 0 : index
    %c16 = arith.constant 16 : index
    %118 = vector.load %arg7[%c0_57, %c16] : memref<16x32xf32, #tpu.memory_space<vmem>>, vector<8x8xf32>
    tpu.vector_store %arg7[%c0_57, %c16], %117 {strides = array<i32>} : memref<16x32xf32, #tpu.memory_space<vmem>>, vector<8x8xf32>,
    %119 = vector.extract_strided_slice %68 {offsets = [0, 24], sizes = [8, 8], strides = [1, 1]} : vector<8x96xf32> to vector<8x8xf32>
    %120 = vector.extract_strided_slice %68 {offsets = [0, 56], sizes = [8, 8], strides = [1, 1]} : vector<8x96xf32> to vector<8x8xf32>
    %121 = vector.extract_strided_slice %68 {offsets = [0, 88], sizes = [8, 8], strides = [1, 1]} : vector<8x96xf32> to vector<8x8xf32>
    %cst_58 = arith.constant dense<0.000000e+00> : vector<8x8xf32>
    %122 = tpu.matmul %119, %120, %cst_58 {dimension_numbers = #tpu.dot_dimension_numbers<[1], [1], [0], [0], [0, 0, 1, 0], [], []>} : vector<8x8xf32>, vector<8x8xf32>, vector<8x8xf32> -> vector<8x8xf32>
    %123 = arith.addf %122, %70 : vector<8x8xf32>
    %cst_59 = arith.constant dense<0xFF800000> : vector<8xf32>
    %124 = vector.multi_reduction <maximumf>, %123, %cst_59 [1] : vector<8x8xf32> to vector<8xf32>
    %125 = vector.shape_cast %124 : vector<8xf32> to vector<8x1xf32>
    %126 = vector.broadcast %125 : vector<8x1xf32> to vector<8x8xf32>
    %127 = arith.subf %123, %126 : vector<8x8xf32>
    %128 = math.exp %127 : vector<8x8xf32>
    %cst_60 = arith.constant dense<0.000000e+00> : vector<8xf32>
    %129 = vector.multi_reduction <add>, %128, %cst_60 [1] : vector<8x8xf32> to vector<8xf32>
    %130 = vector.shape_cast %129 : vector<8xf32> to vector<8x1xf32>
    %131 = vector.broadcast %130 : vector<8x1xf32> to vector<8x8xf32>
    %132 = arith.divf %128, %131 : vector<8x8xf32>
    %cst_61 = arith.constant dense<0.000000e+00> : vector<8x8xf32>
    %133 = tpu.matmul %132, %121, %cst_61 {dimension_numbers = #tpu.dot_dimension_numbers<[1], [0], [0], [1], [0, 0, 1, 1], [], []>} : vector<8x8xf32>, vector<8x8xf32>, vector<8x8xf32> -> vector<8x8xf32>
    %c0_62 = arith.constant 0 : index
    %c24 = arith.constant 24 : index
    %134 = vector.load %arg7[%c0_62, %c24] : memref<16x32xf32, #tpu.memory_space<vmem>>, vector<8x8xf32>
    tpu.vector_store %arg7[%c0_62, %c24], %133 {strides = array<i32>} : memref<16x32xf32, #tpu.memory_space<vmem>>, vector<8x8xf32>,
    %135 = vector.extract_strided_slice %67 {offsets = [8, 0], sizes = [8, 96], strides = [1, 1]} : vector<16x96xf32> to vector<8x96xf32>
    %c1_63 = arith.constant 1 : index
    %c0_64 = arith.constant 0 : index
    %c0_65 = arith.constant 0 : index
    %136 = vector.load %arg1[%c1_63, %c0_64, %c0_65] : memref<2x8x8xf32, #tpu.memory_space<vmem>>, vector<1x8x8xf32>
    %137 = vector.shape_cast %136 : vector<1x8x8xf32> to vector<8x8xf32>
    %138 = vector.extract_strided_slice %135 {offsets = [0, 0], sizes = [8, 8], strides = [1, 1]} : vector<8x96xf32> to vector<8x8xf32>
    %139 = vector.extract_strided_slice %135 {offsets = [0, 32], sizes = [8, 8], strides = [1, 1]} : vector<8x96xf32> to vector<8x8xf32>
    %140 = vector.extract_strided_slice %135 {offsets = [0, 64], sizes = [8, 8], strides = [1, 1]} : vector<8x96xf32> to vector<8x8xf32>
    %cst_66 = arith.constant dense<0.000000e+00> : vector<8x8xf32>
    %141 = tpu.matmul %138, %139, %cst_66 {dimension_numbers = #tpu.dot_dimension_numbers<[1], [1], [0], [0], [0, 0, 1, 0], [], []>} : vector<8x8xf32>, vector<8x8xf32>, vector<8x8xf32> -> vector<8x8xf32>
    %142 = arith.addf %141, %137 : vector<8x8xf32>
    %cst_67 = arith.constant dense<0xFF800000> : vector<8xf32>
    %143 = vector.multi_reduction <maximumf>, %142, %cst_67 [1] : vector<8x8xf32> to vector<8xf32>
    %144 = vector.shape_cast %143 : vector<8xf32> to vector<8x1xf32>
    %145 = vector.broadcast %144 : vector<8x1xf32> to vector<8x8xf32>
    %146 = arith.subf %142, %145 : vector<8x8xf32>
    %147 = math.exp %146 : vector<8x8xf32>
    %cst_68 = arith.constant dense<0.000000e+00> : vector<8xf32>
    %148 = vector.multi_reduction <add>, %147, %cst_68 [1] : vector<8x8xf32> to vector<8xf32>
    %149 = vector.shape_cast %148 : vector<8xf32> to vector<8x1xf32>
    %150 = vector.broadcast %149 : vector<8x1xf32> to vector<8x8xf32>
    %151 = arith.divf %147, %150 : vector<8x8xf32>
    %cst_69 = arith.constant dense<0.000000e+00> : vector<8x8xf32>
    %152 = tpu.matmul %151, %140, %cst_69 {dimension_numbers = #tpu.dot_dimension_numbers<[1], [0], [0], [1], [0, 0, 1, 1], [], []>} : vector<8x8xf32>, vector<8x8xf32>, vector<8x8xf32> -> vector<8x8xf32>
    %c8_70 = arith.constant 8 : index
    %c0_71 = arith.constant 0 : index
    %153 = vector.load %arg7[%c8_70, %c0_71] : memref<16x32xf32, #tpu.memory_space<vmem>>, vector<8x8xf32>
    tpu.vector_store %arg7[%c8_70, %c0_71], %152 {strides = array<i32>} : memref<16x32xf32, #tpu.memory_space<vmem>>, vector<8x8xf32>,
    %154 = vector.extract_strided_slice %135 {offsets = [0, 8], sizes = [8, 8], strides = [1, 1]} : vector<8x96xf32> to vector<8x8xf32>
    %155 = vector.extract_strided_slice %135 {offsets = [0, 40], sizes = [8, 8], strides = [1, 1]} : vector<8x96xf32> to vector<8x8xf32>
    %156 = vector.extract_strided_slice %135 {offsets = [0, 72], sizes = [8, 8], strides = [1, 1]} : vector<8x96xf32> to vector<8x8xf32>
    %cst_72 = arith.constant dense<0.000000e+00> : vector<8x8xf32>
    %157 = tpu.matmul %154, %155, %cst_72 {dimension_numbers = #tpu.dot_dimension_numbers<[1], [1], [0], [0], [0, 0, 1, 0], [], []>} : vector<8x8xf32>, vector<8x8xf32>, vector<8x8xf32> -> vector<8x8xf32>
    %158 = arith.addf %157, %137 : vector<8x8xf32>
    %cst_73 = arith.constant dense<0xFF800000> : vector<8xf32>
    %159 = vector.multi_reduction <maximumf>, %158, %cst_73 [1] : vector<8x8xf32> to vector<8xf32>
    %160 = vector.shape_cast %159 : vector<8xf32> to vector<8x1xf32>
    %161 = vector.broadcast %160 : vector<8x1xf32> to vector<8x8xf32>
    %162 = arith.subf %158, %161 : vector<8x8xf32>
    %163 = math.exp %162 : vector<8x8xf32>
    %cst_74 = arith.constant dense<0.000000e+00> : vector<8xf32>
    %164 = vector.multi_reduction <add>, %163, %cst_74 [1] : vector<8x8xf32> to vector<8xf32>
    %165 = vector.shape_cast %164 : vector<8xf32> to vector<8x1xf32>
    %166 = vector.broadcast %165 : vector<8x1xf32> to vector<8x8xf32>
    %167 = arith.divf %163, %166 : vector<8x8xf32>
    %cst_75 = arith.constant dense<0.000000e+00> : vector<8x8xf32>
    %168 = tpu.matmul %167, %156, %cst_75 {dimension_numbers = #tpu.dot_dimension_numbers<[1], [0], [0], [1], [0, 0, 1, 1], [], []>} : vector<8x8xf32>, vector<8x8xf32>, vector<8x8xf32> -> vector<8x8xf32>
    %c8_76 = arith.constant 8 : index
    %c8_77 = arith.constant 8 : index
    %169 = vector.load %arg7[%c8_76, %c8_77] : memref<16x32xf32, #tpu.memory_space<vmem>>, vector<8x8xf32>
    tpu.vector_store %arg7[%c8_76, %c8_77], %168 {strides = array<i32>} : memref<16x32xf32, #tpu.memory_space<vmem>>, vector<8x8xf32>,
    %170 = vector.extract_strided_slice %135 {offsets = [0, 16], sizes = [8, 8], strides = [1, 1]} : vector<8x96xf32> to vector<8x8xf32>
    %171 = vector.extract_strided_slice %135 {offsets = [0, 48], sizes = [8, 8], strides = [1, 1]} : vector<8x96xf32> to vector<8x8xf32>
    %172 = vector.extract_strided_slice %135 {offsets = [0, 80], sizes = [8, 8], strides = [1, 1]} : vector<8x96xf32> to vector<8x8xf32>
    %cst_78 = arith.constant dense<0.000000e+00> : vector<8x8xf32>
    %173 = tpu.matmul %170, %171, %cst_78 {dimension_numbers = #tpu.dot_dimension_numbers<[1], [1], [0], [0], [0, 0, 1, 0], [], []>} : vector<8x8xf32>, vector<8x8xf32>, vector<8x8xf32> -> vector<8x8xf32>
    %174 = arith.addf %173, %137 : vector<8x8xf32>
    %cst_79 = arith.constant dense<0xFF800000> : vector<8xf32>
    %175 = vector.multi_reduction <maximumf>, %174, %cst_79 [1] : vector<8x8xf32> to vector<8xf32>
    %176 = vector.shape_cast %175 : vector<8xf32> to vector<8x1xf32>
    %177 = vector.broadcast %176 : vector<8x1xf32> to vector<8x8xf32>
    %178 = arith.subf %174, %177 : vector<8x8xf32>
    %179 = math.exp %178 : vector<8x8xf32>
    %cst_80 = arith.constant dense<0.000000e+00> : vector<8xf32>
    %180 = vector.multi_reduction <add>, %179, %cst_80 [1] : vector<8x8xf32> to vector<8xf32>
    %181 = vector.shape_cast %180 : vector<8xf32> to vector<8x1xf32>
    %182 = vector.broadcast %181 : vector<8x1xf32> to vector<8x8xf32>
    %183 = arith.divf %179, %182 : vector<8x8xf32>
    %cst_81 = arith.constant dense<0.000000e+00> : vector<8x8xf32>
    %184 = tpu.matmul %183, %172, %cst_81 {dimension_numbers = #tpu.dot_dimension_numbers<[1], [0], [0], [1], [0, 0, 1, 1], [], []>} : vector<8x8xf32>, vector<8x8xf32>, vector<8x8xf32> -> vector<8x8xf32>
    %c8_82 = arith.constant 8 : index
    %c16_83 = arith.constant 16 : index
    %185 = vector.load %arg7[%c8_82, %c16_83] : memref<16x32xf32, #tpu.memory_space<vmem>>, vector<8x8xf32>
    tpu.vector_store %arg7[%c8_82, %c16_83], %184 {strides = array<i32>} : memref<16x32xf32, #tpu.memory_space<vmem>>, vector<8x8xf32>,
    %186 = vector.extract_strided_slice %135 {offsets = [0, 24], sizes = [8, 8], strides = [1, 1]} : vector<8x96xf32> to vector<8x8xf32>
    %187 = vector.extract_strided_slice %135 {offsets = [0, 56], sizes = [8, 8], strides = [1, 1]} : vector<8x96xf32> to vector<8x8xf32>
    %188 = vector.extract_strided_slice %135 {offsets = [0, 88], sizes = [8, 8], strides = [1, 1]} : vector<8x96xf32> to vector<8x8xf32>
    %cst_84 = arith.constant dense<0.000000e+00> : vector<8x8xf32>
    %189 = tpu.matmul %186, %187, %cst_84 {dimension_numbers = #tpu.dot_dimension_numbers<[1], [1], [0], [0], [0, 0, 1, 0], [], []>} : vector<8x8xf32>, vector<8x8xf32>, vector<8x8xf32> -> vector<8x8xf32>
    %190 = arith.addf %189, %137 : vector<8x8xf32>
    %cst_85 = arith.constant dense<0xFF800000> : vector<8xf32>
    %191 = vector.multi_reduction <maximumf>, %190, %cst_85 [1] : vector<8x8xf32> to vector<8xf32>
    %192 = vector.shape_cast %191 : vector<8xf32> to vector<8x1xf32>
    %193 = vector.broadcast %192 : vector<8x1xf32> to vector<8x8xf32>
    %194 = arith.subf %190, %193 : vector<8x8xf32>
    %195 = math.exp %194 : vector<8x8xf32>
    %cst_86 = arith.constant dense<0.000000e+00> : vector<8xf32>
    %196 = vector.multi_reduction <add>, %195, %cst_86 [1] : vector<8x8xf32> to vector<8xf32>
    %197 = vector.shape_cast %196 : vector<8xf32> to vector<8x1xf32>
    %198 = vector.broadcast %197 : vector<8x1xf32> to vector<8x8xf32>
    %199 = arith.divf %195, %198 : vector<8x8xf32>
    %cst_87 = arith.constant dense<0.000000e+00> : vector<8x8xf32>
    %200 = tpu.matmul %199, %188, %cst_87 {dimension_numbers = #tpu.dot_dimension_numbers<[1], [0], [0], [1], [0, 0, 1, 1], [], []>} : vector<8x8xf32>, vector<8x8xf32>, vector<8x8xf32> -> vector<8x8xf32>
    %c8_88 = arith.constant 8 : index
    %c24_89 = arith.constant 24 : index
    %201 = vector.load %arg7[%c8_88, %c24_89] : memref<16x32xf32, #tpu.memory_space<vmem>>, vector<8x8xf32>
    tpu.vector_store %arg7[%c8_88, %c24_89], %200 {strides = array<i32>} : memref<16x32xf32, #tpu.memory_space<vmem>>, vector<8x8xf32>,
    %c0_90 = arith.constant 0 : index
    %c0_91 = arith.constant 0 : index
    %202 = vector.load %arg7[%c0_90, %c0_91] : memref<16x32xf32, #tpu.memory_space<vmem>>, vector<16x32xf32>
    %cst_92 = arith.constant dense<0.000000e+00> : vector<16x32xf32>
    %203 = tpu.matmul %202, %54, %cst_92 {dimension_numbers = #tpu.dot_dimension_numbers<[1], [0], [0], [1], [0, 0, 1, 1], [], []>} : vector<16x32xf32>, vector<32x32xf32>, vector<16x32xf32> -> vector<16x32xf32>
    %204 = vector.broadcast %64 : vector<1x32xf32> to vector<16x32xf32>
    %205 = arith.addf %203, %204 : vector<16x32xf32>
    %206 = arith.addf %205, %2 : vector<16x32xf32>
    %c0_93 = arith.constant 0 : index
    %c0_94 = arith.constant 0 : index
    %207 = vector.load %arg6[%c0_93, %c0_94] : memref<16x32xf32, #tpu.memory_space<vmem>>, vector<16x32xf32>
    tpu.vector_store %arg6[%c0_93, %c0_94], %206 {strides = array<i32>} : memref<16x32xf32, #tpu.memory_space<vmem>>, vector<16x32xf32>,
    return
  }
}

</mosaic_0001>

<llo_original>
// kernel: tpu_custom_call.1
$region0: #{tpu_custom_call.1}
  #allocation0 [shape = 'u32[]', space=smem, size = 0x4, offset = 0x4, fixed_abs, tag = 'smem constant byte address 0x4 - core index']
  #allocation1 [shape = 'u32[144,128]{1,0:T(1,128)}', space=vmem, size = 0x12000, scoped, tag = 'internal scratch']
  #allocation2 [shape = 'f32[16,32]{1,0:T(8,128)}', space=vmem, size = 0x2000, scoped, tag = 'scratch operand']
  %s0 = inlined_call_operand.hbm [shape: f32[16,32], index: 0, kind: input, shape index: {}, may-alias: {0,6}]
  %s1 = inlined_call_operand.vmem [shape: f32[2,8,8], index: 1, kind: input, shape index: {}]
  %s2 = inlined_call_operand.hbm [shape: f32[4,32,96], index: 2, kind: input, shape index: {}]
  %s3 = inlined_call_operand.hbm [shape: f32[4,32,32], index: 3, kind: input, shape index: {}]
  %s4 = inlined_call_operand.vmem [shape: f32[8,96], index: 4, kind: input, shape index: {}]
  %s5 = inlined_call_operand.vmem [shape: f32[2], index: 5, kind: input, shape index: {}]
  %s6 = inlined_call_operand.hbm [shape: f32[16,32], index: 6, kind: output, shape index: {}, may-alias: {0,6}]
  %s7 = sld [smem:[#allocation0]]
  $region50: #{tpu_custom_call.1} parent=0
    _
  %s9 = ssub.s32 1, %s7
  %s10 = scalar_select 0, %s9, %s7
  $region1: #{tpu_custom_call.1} parent=0
    #allocation3 [shape = 'u8[8192]{0}', space=vmem, size = 0x2000, scoped, tag = 'input window, operand 0, single buffered']
    #allocation4 [shape = 's32[1]{0}', space=sflag, size = 0x4, scoped, tag = 'scoped memory for tpu_custom_call.1']
    #allocation5 [shape = 's32[1]{0}', space=sflag, size = 0x4, scoped, tag = 'scoped memory for tpu_custom_call.1']
    #allocation6 [shape = 's32[1]{0}', space=sflag, size = 0x4, scoped, tag = 'scoped memory for tpu_custom_call.1']
    #allocation7 [shape = 'u8[65536]{0}', space=vmem, size = 0x10000, scoped, tag = 'input window, operand 2, single buffered']
    #allocation8 [shape = 's32[1]{0}', space=sflag, size = 0x4, scoped, tag = 'scoped memory for tpu_custom_call.1']
    #allocation9 [shape = 'u8[65536]{0}', space=vmem, size = 0x10000, scoped, tag = 'input window, operand 3, single buffered']
    #allocation10 [shape = 'u8[512]{0}', space=smem, size = 0x200, scoped, tag = 'input window, operand 5, single buffered']
    #allocation11 [shape = 'u8[8192]{0}', space=vmem, size = 0x2000, scoped, tag = 'output window, operand 0, single buffered']
    %11 = vsyncpa [#allocation4], 0
    %12 = vsyncpa [#allocation8], 0
    %13 = vsyncpa [#allocation6], 0
    %14 = vsyncpa [#allocation5], 0
    // Predicated region
    $region2: #{tpu_custom_call.1} parent=1 // pred_check
      _
    $region3: #{tpu_custom_call.1} parent=1 // pred_check_branch
      %16 = sbr.rel (0) target = $region5
    $region4: #{tpu_custom_call.1} parent=1 // pred_region
      %s18 = ssub.s32 256, 256
      %19 = vsyncadd [#allocation4], %s18
      %s20 = sshll.u32 [#allocation3], 4
      %s21 = int_to_ptr.vmem [resolvable:$true] %s20
      %26 = dma.hbm_to_vmem [thread:$0]  %s0, 256, %s21, [#allocation4], 128, 128, 8
    $region5: #{tpu_custom_call.1} parent=1 // pred_fallthru
      _
    // Predicated region
    $region6: #{tpu_custom_call.1} parent=1 // pred_check
      _
    $region7: #{tpu_custom_call.1} parent=1 // pred_check_branch
      %28 = sbr.rel (0) target = $region9
    $region8: #{tpu_custom_call.1} parent=1 // pred_region
      _
    $region9: #{tpu_custom_call.1} parent=1 // pred_fallthru
      _
    // Predicated region
    $region10: #{tpu_custom_call.1} parent=1 // pred_check
      _
    $region11: #{tpu_custom_call.1} parent=1 // pred_check_branch
      %30 = sbr.rel (0) target = $region13
    $region12: #{tpu_custom_call.1} parent=1 // pred_region
      %s32 = ssub.s32 2048, 2048
      %33 = vsyncadd [#allocation8], %s32
      %s34 = sshll.u32 [#allocation7], 4
      %s35 = int_to_ptr.vmem [resolvable:$true] %s34
      %40 = dma.hbm_to_vmem [thread:$0]  %s2, 2048, %s35, [#allocation8], 128, 128, 8
    $region13: #{tpu_custom_call.1} parent=1 // pred_fallthru
      _
    // Predicated region
    $region14: #{tpu_custom_call.1} parent=1 // pred_check
      _
    $region15: #{tpu_custom_call.1} parent=1 // pred_check_branch
      %42 = sbr.rel (0) target = $region17
    $region16: #{tpu_custom_call.1} parent=1 // pred_region
      %s44 = ssub.s32 2048, 2048
      %45 = vsyncadd [#allocation8], %s44
      %s46 = sshll.u32 [#allocation9], 4
      %s47 = int_to_ptr.vmem [resolvable:$true] %s46
      %52 = dma.hbm_to_vmem [thread:$0]  %s3, 2048, %s47, [#allocation8], 128, 128, 8
    $region17: #{tpu_custom_call.1} parent=1 // pred_fallthru
      _
    // Predicated region
    $region18: #{tpu_custom_call.1} parent=1 // pred_check
      _
    $region19: #{tpu_custom_call.1} parent=1 // pred_check_branch
      %54 = sbr.rel (0) target = $region21
    $region20: #{tpu_custom_call.1} parent=1 // pred_region
      _
    $region21: #{tpu_custom_call.1} parent=1 // pred_fallthru
      _
    // Predicated region
    $region22: #{tpu_custom_call.1} parent=1 // pred_check
      _
    $region23: #{tpu_custom_call.1} parent=1 // pred_check_branch
      %56 = sbr.rel (0) target = $region25
    $region24: #{tpu_custom_call.1} parent=1 // pred_region
      %s58 = ssub.s32 16, 16
      %59 = vsyncadd [#allocation6], %s58
      %s61 = sshll.u32 %s5, 4
      %s62 = int_to_ptr.vmem [resolvable:$true] %s61
      %64 = dma.vmem_to_smem %s62, 16, [#allocation10], [#allocation6]
    $region25: #{tpu_custom_call.1} parent=1 // pred_fallthru
      _
    // Predicated region
    $region26: #{tpu_custom_call.1} parent=1 // pred_check
      _
    $region27: #{tpu_custom_call.1} parent=1 // pred_check_branch
      %66 = sbr.rel (0) target = $region29
    $region28: #{tpu_custom_call.1} parent=1 // pred_region
      %67 = dma.done [#allocation4], 256
    $region29: #{tpu_custom_call.1} parent=1 // pred_fallthru
      _
    // Predicated region
    $region30: #{tpu_custom_call.1} parent=1 // pred_check
      _
    $region31: #{tpu_custom_call.1} parent=1 // pred_check_branch
      %69 = sbr.rel (0) target = $region33
    $region32: #{tpu_custom_call.1} parent=1 // pred_region
      %70 = dma.done [#allocation8], 2048
    $region33: #{tpu_custom_call.1} parent=1 // pred_fallthru
      _
    // Predicated region
    $region34: #{tpu_custom_call.1} parent=1 // pred_check
      _
    $region35: #{tpu_custom_call.1} parent=1 // pred_check_branch
      %72 = sbr.rel (0) target = $region37
    $region36: #{tpu_custom_call.1} parent=1 // pred_region
      %73 = dma.done [#allocation8], 2048
    $region37: #{tpu_custom_call.1} parent=1 // pred_fallthru
      _
    // Predicated region
    $region38: #{tpu_custom_call.1} parent=1 // pred_check
      _
    $region39: #{tpu_custom_call.1} parent=1 // pred_check_branch
      %75 = sbr.rel (0) target = $region41
    $region40: #{tpu_custom_call.1} parent=1 // pred_region
      %76 = dma.done [#allocation6], 16
    $region41: #{tpu_custom_call.1} parent=1 // pred_fallthru
      _
    %77 = sfence
    %s78 = sld [smem:[#allocation10]]
    %s79 = sld [smem:[#allocation10 + $0x1]]
    %v80 = vld [vmem:[#allocation3] sm:$0xff]
    %v81 = vld [vmem:[#allocation3 + $0x8] sm:$0xff]
    %vm82 = vcmask 261120
    %v83 = vsel %vm82, %v80, 0.0
    %84 = vadd.xlane.f32.xlu0 %v83
    %v85 = vpop.xlane.xlu0 %84
    %v86 = vsel %vm82, %v81, 0.0
    %87 = vadd.xlane.f32.xlu0 %v86
    %v88 = vpop.xlane.xlu0 %87
    %v89 = vrcp.pop 32.0
    %v90 = vmul.f32 %v85, %v89
    %v91 = vmul.f32 %v88, %v89
    %v92 = vsub.f32 %v80, %v90
    %v93 = vsub.f32 %v81, %v91
    %v94 = vmul.f32 %v92, %v92
    %v95 = vmul.f32 %v93, %v93
    %v96 = vsel %vm82, %v94, 0.0
    %97 = vadd.xlane.f32.xlu0 %v96
    %v98 = vpop.xlane.xlu0 %97
    %v99 = vsel %vm82, %v95, 0.0
    %100 = vadd.xlane.f32.xlu0 %v99
    %v101 = vpop.xlane.xlu0 %100
    %v102 = vmul.f32 %v98, %v89
    %v103 = vmul.f32 %v101, %v89
    %v104 = vld [vmem:[%s4] sm:$0x1]
    %v105 = vld [vmem:[%s4 + $0x1] sm:$0x1]
    %v106 = vadd.f32 %v102, 1e-12
    %v107 = vadd.f32 %v103, 1e-12
    %v108 = vrsqrt.pop %v106
    %v109 = vrsqrt.pop %v107
    %v110 = vmul.f32 %v92, %v108
    %v111 = vmul.f32 %v93, %v109
    %v112 = vlaneseq
    %v113 = vshrl.u32 %v112, 7
    %v114 = vsub.s32 0, %v113
    %v115 = vrot.slane %v104, %v114
    %v116 = vmul.f32 %v110, %v115
    %v117 = vmul.f32 %v111, %v115
    %v118 = vlaneseq
    %v119 = vshrl.u32 %v118, 7
    %v120 = vsub.s32 0, %v119
    %v121 = vrot.slane %v105, %v120
    %v122 = vadd.f32 %v116, %v121
    %v123 = vadd.f32 %v117, %v121
    %v124 = vld [vmem:[#allocation7] sm:$0xff]
    %v125 = vld [vmem:[#allocation7 + $0x8] sm:$0xff]
    %v126 = vld [vmem:[#allocation7 + $0x10] sm:$0xff]
    %v127 = vld [vmem:[#allocation7 + $0x18] sm:$0xff]
    %s128 = scalar_lea.vmem [#allocation7], 32
    %v129 = vld [vmem:[%s128] sm:$0xff]
    %v130 = vld [vmem:[%s128 + $0x8] sm:$0xff]
    %v131 = vld [vmem:[%s128 + $0x10] sm:$0xff]
    %v132 = vld [vmem:[%s128 + $0x18] sm:$0xff]
    %s133 = scalar_lea.vmem [#allocation7], 64
    %v134 = vld [vmem:[%s133] sm:$0xff]
    %v135 = vld [vmem:[%s133 + $0x8] sm:$0xff]
    %v136 = vld [vmem:[%s133 + $0x10] sm:$0xff]
    %v137 = vld [vmem:[%s133 + $0x18] sm:$0xff]
    %v138 = vstv %s78
    %v139 = vmul.f32 %v138, %v134
    %v140 = vmul.f32 %v138, %v135
    %v141 = vmul.f32 %v138, %v136
    %v142 = vmul.f32 %v138, %v137
    %s143 = scalar_lea.vmem [#allocation7], 96
    %v144 = vld [vmem:[%s143] sm:$0xff]
    %v145 = vld [vmem:[%s143 + $0x8] sm:$0xff]
    %v146 = vld [vmem:[%s143 + $0x10] sm:$0xff]
    %v147 = vld [vmem:[%s143 + $0x18] sm:$0xff]
    %v148 = vadd.f32 %v139, %v144
    %v149 = vadd.f32 %v140, %v145
    %v150 = vadd.f32 %v141, %v146
    %v151 = vadd.f32 %v142, %v147
    %v152 = vand.u32 2147483647, %v148
    %vm153 = vcmp.le.f32.partialorder %v152, 0.7853982
    %vm154 = vcmp.lt.s32.totalorder %v148, 0
    %v155 = vand.u32 %v148, 2139095040
    %v156 = vshrl.u32 %v155, 23
    %v157 = vsub.s32 %v156, 127
    %v158 = vand.u32 2147483647, %v148
    %v159 = vand.u32 %v158, 8388607
    %v160 = vor.u32 %v159, 8388608
    %v161 = vsub.s32 0, %v160
    %v162 = vadd.s32 %v157, 1
    %vm163 = vcmp.gt.s32.totalorder %v162, 0
    %v164 = vsel %vm163, %v162, 0
    %v165 = vshrl.u32 %v164, 5
    %v166 = vand.u32 %v164, 31
    %v167 = vsub.s32 32, %v166
    %v168 = vshrl.u32 683565275, %v167
    %v169 = vshll.u32 683565275, %v166
    %v170 = vshrl.u32 2475754826, %v167
    %v171 = vor.u32 %v169, %v170
    %v172 = vshll.u32 2475754826, %v166
    %v173 = vshrl.u32 2131351028, %v167
    %v174 = vor.u32 %v172, %v173
    %v175 = vshll.u32 2131351028, %v166
    %v176 = vshrl.u32 2102212464, %v167
    %v177 = vor.u32 %v175, %v176
    %v178 = vshll.u32 2102212464, %v166
    %v179 = vshrl.u32 920167782, %v167
    %v180 = vor.u32 %v178, %v179
    %v181 = vshll.u32 920167782, %v166
    %v182 = vshrl.u32 1326507024, %v167
    %v183 = vor.u32 %v181, %v182
    %vm184 = vcmp.lt.s32.totalorder %v165, 1
    %vm185 = vcmp.lt.s32.totalorder %v165, 2
    %vm186 = vcmp.lt.s32.totalorder %v165, 3
    %vm187 = vcmp.lt.s32.totalorder %v165, 4
    %v188 = vsel %vm184, %v168, %v171
    %v189 = vsel %vm187, %v177, 2102212464
    %v190 = vsel %vm186, %v174, %v189
    %v191 = vsel %vm185, %v188, %v190
    %v192 = vsel %vm184, %v171, %v174
    %v193 = vsel %vm187, %v180, 920167782
    %v194 = vsel %vm186, %v177, %v193
    %v195 = vsel %vm185, %v192, %v194
    %v196 = vsel %vm184, %v174, %v177
    %v197 = vsel %vm187, %v183, 1326507024
    %v198 = vsel %vm186, %v180, %v197
    %v199 = vsel %vm185, %v196, %v198
    %v200 = vshll.u32 %v160, 8
    %v201 = vmul.u32.u64.compose %v200, %v199
    %v202 = vextract.low.u32 %v201
    %v203 = vextract.high.u32 %v201
    %v204 = vmul.u32.u64.compose %v200, %v195
    %v205 = vextract.low.u32 %v204
    %v206 = vextract.high.u32 %v204
    %v207 = vmul.u32 %v200, %v191
    %v208 = vadd.s32 %v203, %v205
    %vm209 = vc.u32 %v203, %v205
    %v210 = vadd.s32 %v206, 1
    %v211 = vsel %vm209, %v210, %v206
    %v212 = vadd.s32 %v207, %v211
    %v213 = vadd.s32 %v212, 536870912
    %v214 = vshrl.u32 %v213, 30
    %v215 = vshll.u32 %v214, 30
    %v216 = vsub.s32 %v212, %v215
    %vm217 = vcmp.lt.s32.totalorder %v216, 0
    %v218 = vsub.s32 0, %v216
    %v219 = vsel %vm217, %v218, %v216
    %v220 = vclz %v219
    %v221 = vsub.s32 %v220, 2
    %vm222 = vcmp.gt.s32.totalorder 0, %v221
    %v223 = vsel %vm222, 0, %v221
    %v224 = vsub.s32 32, %v223
    %v225 = vshll.u32 %v216, %v223
    %v226 = vshrl.u32 %v208, %v224
    %v227 = vor.u32 %v225, %v226
    %v228 = vsub.s32 4294967266, %v223
    %v229 = vadd.s32 %v228, 127
    %v230 = vshll.u32 %v229, 23
    %v231 = vor.u32 4788187, %v230
    %v232 = vand.u32 2147483647, %v231
    %v234 = vcvt.s32.f32 %v227
    %v235 = vmul.f32 %v234, %v232
    %v236 = vxor.u32 %v235, 2147483648
    %v237 = vsel %vm154, %v236, %v235
    %v238 = vsub.s32 4, %v214
    %v239 = vsel %vm154, %v238, %v214
    %v240 = vsel %vm153, %v148, %v237
    %v241 = vsel %vm153, 0, %v239
    %v242 = vcosq.f32.pop %v240
    %v243 = vsinq.f32.pop %v240
    %vm244 = vweird.f32 %v148
    %v245 = vadd.s32 %v241, 3
    %v246 = vand.u32 %v245, 3
    %vm247 = vcmp.lt.s32.totalorder %v246, 2
    %vm248 = vcmp.eq.s32.totalorder %v246, 0
    %v249 = vxor.u32 %v243, 2147483648
    %v250 = vsel %vm248, %v242, %v249
    %vm251 = vcmp.eq.s32.totalorder %v246, 2
    %v252 = vxor.u32 %v242, 2147483648
    %v253 = vsel %vm251, %v252, %v243
    %v254 = vsel %vm247, %v250, %v253
    %v255 = vsel %vm244, nan, %v254
    %v256 = vand.u32 2147483647, %v149
    %vm257 = vcmp.le.f32.partialorder %v256, 0.7853982
    %vm258 = vcmp.lt.s32.totalorder %v149, 0
    %v259 = vand.u32 %v149, 2139095040
    %v260 = vshrl.u32 %v259, 23
    %v261 = vsub.s32 %v260, 127
    %v262 = vand.u32 2147483647, %v149
    %v263 = vand.u32 %v262, 8388607
    %v264 = vor.u32 %v263, 8388608
    %v265 = vsub.s32 0, %v264
    %v266 = vadd.s32 %v261, 1
    %vm267 = vcmp.gt.s32.totalorder %v266, 0
    %v268 = vsel %vm267, %v266, 0
    %v269 = vshrl.u32 %v268, 5
    %v270 = vand.u32 %v268, 31
    %v271 = vsub.s32 32, %v270
    %v272 = vshrl.u32 683565275, %v271
    %v273 = vshll.u32 683565275, %v270
    %v274 = vshrl.u32 2475754826, %v271
    %v275 = vor.u32 %v273, %v274
    %v276 = vshll.u32 2475754826, %v270
    %v277 = vshrl.u32 2131351028, %v271
    %v278 = vor.u32 %v276, %v277
    %v279 = vshll.u32 2131351028, %v270
    %v280 = vshrl.u32 2102212464, %v271
    %v281 = vor.u32 %v279, %v280
    %v282 = vshll.u32 2102212464, %v270
    %v283 = vshrl.u32 920167782, %v271
    %v284 = vor.u32 %v282, %v283
    %v285 = vshll.u32 920167782, %v270
    %v286 = vshrl.u32 1326507024, %v271
    %v287 = vor.u32 %v285, %v286
    %vm288 = vcmp.lt.s32.totalorder %v269, 1
    %vm289 = vcmp.lt.s32.totalorder %v269, 2
    %vm290 = vcmp.lt.s32.totalorder %v269, 3
    %vm291 = vcmp.lt.s32.totalorder %v269, 4
    %v292 = vsel %vm288, %v272, %v275
    %v293 = vsel %vm291, %v281, 2102212464
    %v294 = vsel %vm290, %v278, %v293
    %v295 = vsel %vm289, %v292, %v294
    %v296 = vsel %vm288, %v275, %v278
    %v297 = vsel %vm291, %v284, 920167782
    %v298 = vsel %vm290, %v281, %v297
    %v299 = vsel %vm289, %v296, %v298
    %v300 = vsel %vm288, %v278, %v281
    %v301 = vsel %vm291, %v287, 1326507024
    %v302 = vsel %vm290, %v284, %v301
    %v303 = vsel %vm289, %v300, %v302
    %v304 = vshll.u32 %v264, 8
    %v305 = vmul.u32.u64.compose %v304, %v303
    %v306 = vextract.low.u32 %v305
    %v307 = vextract.high.u32 %v305
    %v308 = vmul.u32.u64.compose %v304, %v299
    %v309 = vextract.low.u32 %v308
    %v310 = vextract.high.u32 %v308
    %v311 = vmul.u32 %v304, %v295
    %v312 = vadd.s32 %v307, %v309
    %vm313 = vc.u32 %v307, %v309
    %v314 = vadd.s32 %v310, 1
    %v315 = vsel %vm313, %v314, %v310
    %v316 = vadd.s32 %v311, %v315
    %v317 = vadd.s32 %v316, 536870912
    %v318 = vshrl.u32 %v317, 30
    %v319 = vshll.u32 %v318, 30
    %v320 = vsub.s32 %v316, %v319
    %vm321 = vcmp.lt.s32.totalorder %v320, 0
    %v322 = vsub.s32 0, %v320
    %v323 = vsel %vm321, %v322, %v320
    %v324 = vclz %v323
    %v325 = vsub.s32 %v324, 2
    %vm326 = vcmp.gt.s32.totalorder 0, %v325
    %v327 = vsel %vm326, 0, %v325
    %v328 = vsub.s32 32, %v327
    %v329 = vshll.u32 %v320, %v327
    %v330 = vshrl.u32 %v312, %v328
    %v331 = vor.u32 %v329, %v330
    %v332 = vsub.s32 4294967266, %v327
    %v333 = vadd.s32 %v332, 127
    %v334 = vshll.u32 %v333, 23
    %v335 = vor.u32 4788187, %v334
    %v336 = vand.u32 2147483647, %v335
    %v338 = vcvt.s32.f32 %v331
    %v339 = vmul.f32 %v338, %v336
    %v340 = vxor.u32 %v339, 2147483648
    %v341 = vsel %vm258, %v340, %v339
    %v342 = vsub.s32 4, %v318
    %v343 = vsel %vm258, %v342, %v318
    %v344 = vsel %vm257, %v149, %v341
    %v345 = vsel %vm257, 0, %v343
    %v346 = vcosq.f32.pop %v344
    %v347 = vsinq.f32.pop %v344
    %vm348 = vweird.f32 %v149
    %v349 = vadd.s32 %v345, 3
    %v350 = vand.u32 %v349, 3
    %vm351 = vcmp.lt.s32.totalorder %v350, 2
    %vm352 = vcmp.eq.s32.totalorder %v350, 0
    %v353 = vxor.u32 %v347, 2147483648
    %v354 = vsel %vm352, %v346, %v353
    %vm355 = vcmp.eq.s32.totalorder %v350, 2
    %v356 = vxor.u32 %v346, 2147483648
    %v357 = vsel %vm355, %v356, %v347
    %v358 = vsel %vm351, %v354, %v357
    %v359 = vsel %vm348, nan, %v358
    %v360 = vand.u32 2147483647, %v150
    %vm361 = vcmp.le.f32.partialorder %v360, 0.7853982
    %vm362 = vcmp.lt.s32.totalorder %v150, 0
    %v363 = vand.u32 %v150, 2139095040
    %v364 = vshrl.u32 %v363, 23
    %v365 = vsub.s32 %v364, 127
    %v366 = vand.u32 2147483647, %v150
    %v367 = vand.u32 %v366, 8388607
    %v368 = vor.u32 %v367, 8388608
    %v369 = vsub.s32 0, %v368
    %v370 = vadd.s32 %v365, 1
    %vm371 = vcmp.gt.s32.totalorder %v370, 0
    %v372 = vsel %vm371, %v370, 0
    %v373 = vshrl.u32 %v372, 5
    %v374 = vand.u32 %v372, 31
    %v375 = vsub.s32 32, %v374
    %v376 = vshrl.u32 683565275, %v375
    %v377 = vshll.u32 683565275, %v374
    %v378 = vshrl.u32 2475754826, %v375
    %v379 = vor.u32 %v377, %v378
    %v380 = vshll.u32 2475754826, %v374
    %v381 = vshrl.u32 2131351028, %v375
    %v382 = vor.u32 %v380, %v381
    %v383 = vshll.u32 2131351028, %v374
    %v384 = vshrl.u32 2102212464, %v375
    %v385 = vor.u32 %v383, %v384
    %v386 = vshll.u32 2102212464, %v374
    %v387 = vshrl.u32 920167782, %v375
    %v388 = vor.u32 %v386, %v387
    %v389 = vshll.u32 920167782, %v374
    %v390 = vshrl.u32 1326507024, %v375
    %v391 = vor.u32 %v389, %v390
    %vm392 = vcmp.lt.s32.totalorder %v373, 1
    %vm393 = vcmp.lt.s32.totalorder %v373, 2
    %vm394 = vcmp.lt.s32.totalorder %v373, 3
    %vm395 = vcmp.lt.s32.totalorder %v373, 4
    %v396 = vsel %vm392, %v376, %v379
    %v397 = vsel %vm395, %v385, 2102212464
    %v398 = vsel %vm394, %v382, %v397
    %v399 = vsel %vm393, %v396, %v398
    %v400 = vsel %vm392, %v379, %v382
    %v401 = vsel %vm395, %v388, 920167782
    %v402 = vsel %vm394, %v385, %v401
    %v403 = vsel %vm393, %v400, %v402
    %v404 = vsel %vm392, %v382, %v385
    %v405 = vsel %vm395, %v391, 1326507024
    %v406 = vsel %vm394, %v388, %v405
    %v407 = vsel %vm393, %v404, %v406
    %v408 = vshll.u32 %v368, 8
    %v409 = vmul.u32.u64.compose %v408, %v407
    %v410 = vextract.low.u32 %v409
    %v411 = vextract.high.u32 %v409
    %v412 = vmul.u32.u64.compose %v408, %v403
    %v413 = vextract.low.u32 %v412
    %v414 = vextract.high.u32 %v412
    %v415 = vmul.u32 %v408, %v399
    %v416 = vadd.s32 %v411, %v413
    %vm417 = vc.u32 %v411, %v413
    %v418 = vadd.s32 %v414, 1
    %v419 = vsel %vm417, %v418, %v414
    %v420 = vadd.s32 %v415, %v419
    %v421 = vadd.s32 %v420, 536870912
    %v422 = vshrl.u32 %v421, 30
    %v423 = vshll.u32 %v422, 30
    %v424 = vsub.s32 %v420, %v423
    %vm425 = vcmp.lt.s32.totalorder %v424, 0
    %v426 = vsub.s32 0, %v424
    %v427 = vsel %vm425, %v426, %v424
    %v428 = vclz %v427
    %v429 = vsub.s32 %v428, 2
    %vm430 = vcmp.gt.s32.totalorder 0, %v429
    %v431 = vsel %vm430, 0, %v429
    %v432 = vsub.s32 32, %v431
    %v433 = vshll.u32 %v424, %v431
    %v434 = vshrl.u32 %v416, %v432
    %v435 = vor.u32 %v433, %v434
    %v436 = vsub.s32 4294967266, %v431
    %v437 = vadd.s32 %v436, 127
    %v438 = vshll.u32 %v437, 23
    %v439 = vor.u32 4788187, %v438
    %v440 = vand.u32 2147483647, %v439
    %v442 = vcvt.s32.f32 %v435
    %v443 = vmul.f32 %v442, %v440
    %v444 = vxor.u32 %v443, 2147483648
    %v445 = vsel %vm362, %v444, %v443
    %v446 = vsub.s32 4, %v422
    %v447 = vsel %vm362, %v446, %v422
    %v448 = vsel %vm361, %v150, %v445
    %v449 = vsel %vm361, 0, %v447
    %v450 = vcosq.f32.pop %v448
    %v451 = vsinq.f32.pop %v448
    %vm452 = vweird.f32 %v150
    %v453 = vadd.s32 %v449, 3
    %v454 = vand.u32 %v453, 3
    %vm455 = vcmp.lt.s32.totalorder %v454, 2
    %vm456 = vcmp.eq.s32.totalorder %v454, 0
    %v457 = vxor.u32 %v451, 2147483648
    %v458 = vsel %vm456, %v450, %v457
    %vm459 = vcmp.eq.s32.totalorder %v454, 2
    %v460 = vxor.u32 %v450, 2147483648
    %v461 = vsel %vm459, %v460, %v451
    %v462 = vsel %vm455, %v458, %v461
    %v463 = vsel %vm452, nan, %v462
    %v464 = vand.u32 2147483647, %v151
    %vm465 = vcmp.le.f32.partialorder %v464, 0.7853982
    %vm466 = vcmp.lt.s32.totalorder %v151, 0
    %v467 = vand.u32 %v151, 2139095040
    %v468 = vshrl.u32 %v467, 23
    %v469 = vsub.s32 %v468, 127
    %v470 = vand.u32 2147483647, %v151
    %v471 = vand.u32 %v470, 8388607
    %v472 = vor.u32 %v471, 8388608
    %v473 = vsub.s32 0, %v472
    %v474 = vadd.s32 %v469, 1
    %vm475 = vcmp.gt.s32.totalorder %v474, 0
    %v476 = vsel %vm475, %v474, 0
    %v477 = vshrl.u32 %v476, 5
    %v478 = vand.u32 %v476, 31
    %v479 = vsub.s32 32, %v478
    %v480 = vshrl.u32 683565275, %v479
    %v481 = vshll.u32 683565275, %v478
    %v482 = vshrl.u32 2475754826, %v479
    %v483 = vor.u32 %v481, %v482
    %v484 = vshll.u32 2475754826, %v478
    %v485 = vshrl.u32 2131351028, %v479
    %v486 = vor.u32 %v484, %v485
    %v487 = vshll.u32 2131351028, %v478
    %v488 = vshrl.u32 2102212464, %v479
    %v489 = vor.u32 %v487, %v488
    %v490 = vshll.u32 2102212464, %v478
    %v491 = vshrl.u32 920167782, %v479
    %v492 = vor.u32 %v490, %v491
    %v493 = vshll.u32 920167782, %v478
    %v494 = vshrl.u32 1326507024, %v479
    %v495 = vor.u32 %v493, %v494
    %vm496 = vcmp.lt.s32.totalorder %v477, 1
    %vm497 = vcmp.lt.s32.totalorder %v477, 2
    %vm498 = vcmp.lt.s32.totalorder %v477, 3
    %vm499 = vcmp.lt.s32.totalorder %v477, 4
    %v500 = vsel %vm496, %v480, %v483
    %v501 = vsel %vm499, %v489, 2102212464
    %v502 = vsel %vm498, %v486, %v501
    %v503 = vsel %vm497, %v500, %v502
    %v504 = vsel %vm496, %v483, %v486
    %v505 = vsel %vm499, %v492, 920167782
    %v506 = vsel %vm498, %v489, %v505
    %v507 = vsel %vm497, %v504, %v506
    %v508 = vsel %vm496, %v486, %v489
    %v509 = vsel %vm499, %v495, 1326507024
    %v510 = vsel %vm498, %v492, %v509
    %v511 = vsel %vm497, %v508, %v510
    %v512 = vshll.u32 %v472, 8
    %v513 = vmul.u32.u64.compose %v512, %v511
    %v514 = vextract.low.u32 %v513
    %v515 = vextract.high.u32 %v513
    %v516 = vmul.u32.u64.compose %v512, %v507
    %v517 = vextract.low.u32 %v516
    %v518 = vextract.high.u32 %v516
    %v519 = vmul.u32 %v512, %v503
    %v520 = vadd.s32 %v515, %v517
    %vm521 = vc.u32 %v515, %v517
    %v522 = vadd.s32 %v518, 1
    %v523 = vsel %vm521, %v522, %v518
    %v524 = vadd.s32 %v519, %v523
    %v525 = vadd.s32 %v524, 536870912
    %v526 = vshrl.u32 %v525, 30
    %v527 = vshll.u32 %v526, 30
    %v528 = vsub.s32 %v524, %v527
    %vm529 = vcmp.lt.s32.totalorder %v528, 0
    %v530 = vsub.s32 0, %v528
    %v531 = vsel %vm529, %v530, %v528
    %v532 = vclz %v531
    %v533 = vsub.s32 %v532, 2
    %vm534 = vcmp.gt.s32.totalorder 0, %v533
    %v535 = vsel %vm534, 0, %v533
    %v536 = vsub.s32 32, %v535
    %v537 = vshll.u32 %v528, %v535
    %v538 = vshrl.u32 %v520, %v536
    %v539 = vor.u32 %v537, %v538
    %v540 = vsub.s32 4294967266, %v535
    %v541 = vadd.s32 %v540, 127
    %v542 = vshll.u32 %v541, 23
    %v543 = vor.u32 4788187, %v542
    %v544 = vand.u32 2147483647, %v543
    %v546 = vcvt.s32.f32 %v539
    %v547 = vmul.f32 %v546, %v544
    %v548 = vxor.u32 %v547, 2147483648
    %v549 = vsel %vm466, %v548, %v547
    %v550 = vsub.s32 4, %v526
    %v551 = vsel %vm466, %v550, %v526
    %v552 = vsel %vm465, %v151, %v549
    %v553 = vsel %vm465, 0, %v551
    %v554 = vcosq.f32.pop %v552
    %v555 = vsinq.f32.pop %v552
    %vm556 = vweird.f32 %v151
    %v557 = vadd.s32 %v553, 3
    %v558 = vand.u32 %v557, 3
    %vm559 = vcmp.lt.s32.totalorder %v558, 2
    %vm560 = vcmp.eq.s32.totalorder %v558, 0
    %v561 = vxor.u32 %v555, 2147483648
    %v562 = vsel %vm560, %v554, %v561
    %vm563 = vcmp.eq.s32.totalorder %v558, 2
    %v564 = vxor.u32 %v554, 2147483648
    %v565 = vsel %vm563, %v564, %v555
    %v566 = vsel %vm559, %v562, %v565
    %v567 = vsel %vm556, nan, %v566
    %v568 = vmul.f32 %v129, %v255
    %v569 = vmul.f32 %v130, %v359
    %v570 = vmul.f32 %v131, %v463
    %v571 = vmul.f32 %v132, %v567
    %v572 = vadd.f32 %v124, %v568
    %v573 = vadd.f32 %v125, %v569
    %v574 = vadd.f32 %v126, %v570
    %v575 = vadd.f32 %v127, %v571
    %v576 = vld [vmem:[#allocation9] sm:$0xff]
    %v577 = vld [vmem:[#allocation9 + $0x8] sm:$0xff]
    %v578 = vld [vmem:[#allocation9 + $0x10] sm:$0xff]
    %v579 = vld [vmem:[#allocation9 + $0x18] sm:$0xff]
    %s580 = scalar_lea.vmem [#allocation9], 32
    %v581 = vld [vmem:[%s580] sm:$0xff]
    %v582 = vld [vmem:[%s580 + $0x8] sm:$0xff]
    %v583 = vld [vmem:[%s580 + $0x10] sm:$0xff]
    %v584 = vld [vmem:[%s580 + $0x18] sm:$0xff]
    %s585 = scalar_lea.vmem [#allocation9], 64
    %v586 = vld [vmem:[%s585] sm:$0xff]
    %v587 = vld [vmem:[%s585 + $0x8] sm:$0xff]
    %v588 = vld [vmem:[%s585 + $0x10] sm:$0xff]
    %v589 = vld [vmem:[%s585 + $0x18] sm:$0xff]
    %v590 = vmul.f32 %v138, %v586
    %v591 = vmul.f32 %v138, %v587
    %v592 = vmul.f32 %v138, %v588
    %v593 = vmul.f32 %v138, %v589
    %s594 = scalar_lea.vmem [#allocation9], 96
    %v595 = vld [vmem:[%s594] sm:$0xff]
    %v596 = vld [vmem:[%s594 + $0x8] sm:$0xff]
    %v597 = vld [vmem:[%s594 + $0x10] sm:$0xff]
    %v598 = vld [vmem:[%s594 + $0x18] sm:$0xff]
    %v599 = vadd.f32 %v590, %v595
    %v600 = vadd.f32 %v591, %v596
    %v601 = vadd.f32 %v592, %v597
    %v602 = vadd.f32 %v593, %v598
    %v603 = vand.u32 2147483647, %v599
    %vm604 = vcmp.le.f32.partialorder %v603, 0.7853982
    %vm605 = vcmp.lt.s32.totalorder %v599, 0
    %v606 = vand.u32 %v599, 2139095040
    %v607 = vshrl.u32 %v606, 23
    %v608 = vsub.s32 %v607, 127
    %v609 = vand.u32 2147483647, %v599
    %v610 = vand.u32 %v609, 8388607
    %v611 = vor.u32 %v610, 8388608
    %v612 = vsub.s32 0, %v611
    %v613 = vadd.s32 %v608, 1
    %vm614 = vcmp.gt.s32.totalorder %v613, 0
    %v615 = vsel %vm614, %v613, 0
    %v616 = vshrl.u32 %v615, 5
    %v617 = vand.u32 %v615, 31
    %v618 = vsub.s32 32, %v617
    %v619 = vshrl.u32 683565275, %v618
    %v620 = vshll.u32 683565275, %v617
    %v621 = vshrl.u32 2475754826, %v618
    %v622 = vor.u32 %v620, %v621
    %v623 = vshll.u32 2475754826, %v617
    %v624 = vshrl.u32 2131351028, %v618
    %v625 = vor.u32 %v623, %v624
    %v626 = vshll.u32 2131351028, %v617
    %v627 = vshrl.u32 2102212464, %v618
    %v628 = vor.u32 %v626, %v627
    %v629 = vshll.u32 2102212464, %v617
    %v630 = vshrl.u32 920167782, %v618
    %v631 = vor.u32 %v629, %v630
    %v632 = vshll.u32 920167782, %v617
    %v633 = vshrl.u32 1326507024, %v618
    %v634 = vor.u32 %v632, %v633
    %vm635 = vcmp.lt.s32.totalorder %v616, 1
    %vm636 = vcmp.lt.s32.totalorder %v616, 2
    %vm637 = vcmp.lt.s32.totalorder %v616, 3
    %vm638 = vcmp.lt.s32.totalorder %v616, 4
    %v639 = vsel %vm635, %v619, %v622
    %v640 = vsel %vm638, %v628, 2102212464
    %v641 = vsel %vm637, %v625, %v640
    %v642 = vsel %vm636, %v639, %v641
    %v643 = vsel %vm635, %v622, %v625
    %v644 = vsel %vm638, %v631, 920167782
    %v645 = vsel %vm637, %v628, %v644
    %v646 = vsel %vm636, %v643, %v645
    %v647 = vsel %vm635, %v625, %v628
    %v648 = vsel %vm638, %v634, 1326507024
    %v649 = vsel %vm637, %v631, %v648
    %v650 = vsel %vm636, %v647, %v649
    %v651 = vshll.u32 %v611, 8
    %v652 = vmul.u32.u64.compose %v651, %v650
    %v653 = vextract.low.u32 %v652
    %v654 = vextract.high.u32 %v652
    %v655 = vmul.u32.u64.compose %v651, %v646
    %v656 = vextract.low.u32 %v655
    %v657 = vextract.high.u32 %v655
    %v658 = vmul.u32 %v651, %v642
    %v659 = vadd.s32 %v654, %v656
    %vm660 = vc.u32 %v654, %v656
    %v661 = vadd.s32 %v657, 1
    %v662 = vsel %vm660, %v661, %v657
    %v663 = vadd.s32 %v658, %v662
    %v664 = vadd.s32 %v663, 536870912
    %v665 = vshrl.u32 %v664, 30
    %v666 = vshll.u32 %v665, 30
    %v667 = vsub.s32 %v663, %v666
    %vm668 = vcmp.lt.s32.totalorder %v667, 0
    %v669 = vsub.s32 0, %v667
    %v670 = vsel %vm668, %v669, %v667
    %v671 = vclz %v670
    %v672 = vsub.s32 %v671, 2
    %vm673 = vcmp.gt.s32.totalorder 0, %v672
    %v674 = vsel %vm673, 0, %v672
    %v675 = vsub.s32 32, %v674
    %v676 = vshll.u32 %v667, %v674
    %v677 = vshrl.u32 %v659, %v675
    %v678 = vor.u32 %v676, %v677
    %v679 = vsub.s32 4294967266, %v674
    %v680 = vadd.s32 %v679, 127
    %v681 = vshll.u32 %v680, 23
    %v682 = vor.u32 4788187, %v681
    %v683 = vand.u32 2147483647, %v682
    %v685 = vcvt.s32.f32 %v678
    %v686 = vmul.f32 %v685, %v683
    %v687 = vxor.u32 %v686, 2147483648
    %v688 = vsel %vm605, %v687, %v686
    %v689 = vsub.s32 4, %v665
    %v690 = vsel %vm605, %v689, %v665
    %v691 = vsel %vm604, %v599, %v688
    %v692 = vsel %vm604, 0, %v690
    %v693 = vcosq.f32.pop %v691
    %v694 = vsinq.f32.pop %v691
    %vm695 = vweird.f32 %v599
    %v696 = vadd.s32 %v692, 3
    %v697 = vand.u32 %v696, 3
    %vm698 = vcmp.lt.s32.totalorder %v697, 2
    %vm699 = vcmp.eq.s32.totalorder %v697, 0
    %v700 = vxor.u32 %v694, 2147483648
    %v701 = vsel %vm699, %v693, %v700
    %vm702 = vcmp.eq.s32.totalorder %v697, 2
    %v703 = vxor.u32 %v693, 2147483648
    %v704 = vsel %vm702, %v703, %v694
    %v705 = vsel %vm698, %v701, %v704
    %v706 = vsel %vm695, nan, %v705
    %v707 = vand.u32 2147483647, %v600
    %vm708 = vcmp.le.f32.partialorder %v707, 0.7853982
    %vm709 = vcmp.lt.s32.totalorder %v600, 0
    %v710 = vand.u32 %v600, 2139095040
    %v711 = vshrl.u32 %v710, 23
    %v712 = vsub.s32 %v711, 127
    %v713 = vand.u32 2147483647, %v600
    %v714 = vand.u32 %v713, 8388607
    %v715 = vor.u32 %v714, 8388608
    %v716 = vsub.s32 0, %v715
    %v717 = vadd.s32 %v712, 1
    %vm718 = vcmp.gt.s32.totalorder %v717, 0
    %v719 = vsel %vm718, %v717, 0
    %v720 = vshrl.u32 %v719, 5
    %v721 = vand.u32 %v719, 31
    %v722 = vsub.s32 32, %v721
    %v723 = vshrl.u32 683565275, %v722
    %v724 = vshll.u32 683565275, %v721
    %v725 = vshrl.u32 2475754826, %v722
    %v726 = vor.u32 %v724, %v725
    %v727 = vshll.u32 2475754826, %v721
    %v728 = vshrl.u32 2131351028, %v722
    %v729 = vor.u32 %v727, %v728
    %v730 = vshll.u32 2131351028, %v721
    %v731 = vshrl.u32 2102212464, %v722
    %v732 = vor.u32 %v730, %v731
    %v733 = vshll.u32 2102212464, %v721
    %v734 = vshrl.u32 920167782, %v722
    %v735 = vor.u32 %v733, %v734
    %v736 = vshll.u32 920167782, %v721
    %v737 = vshrl.u32 1326507024, %v722
    %v738 = vor.u32 %v736, %v737
    %vm739 = vcmp.lt.s32.totalorder %v720, 1
    %vm740 = vcmp.lt.s32.totalorder %v720, 2
    %vm741 = vcmp.lt.s32.totalorder %v720, 3
    %vm742 = vcmp.lt.s32.totalorder %v720, 4
    %v743 = vsel %vm739, %v723, %v726
    %v744 = vsel %vm742, %v732, 2102212464
    %v745 = vsel %vm741, %v729, %v744
    %v746 = vsel %vm740, %v743, %v745
    %v747 = vsel %vm739, %v726, %v729
    %v748 = vsel %vm742, %v735, 920167782
    %v749 = vsel %vm741, %v732, %v748
    %v750 = vsel %vm740, %v747, %v749
    %v751 = vsel %vm739, %v729, %v732
    %v752 = vsel %vm742, %v738, 1326507024
    %v753 = vsel %vm741, %v735, %v752
    %v754 = vsel %vm740, %v751, %v753
    %v755 = vshll.u32 %v715, 8
    %v756 = vmul.u32.u64.compose %v755, %v754
    %v757 = vextract.low.u32 %v756
    %v758 = vextract.high.u32 %v756
    %v759 = vmul.u32.u64.compose %v755, %v750
    %v760 = vextract.low.u32 %v759
    %v761 = vextract.high.u32 %v759
    %v762 = vmul.u32 %v755, %v746
    %v763 = vadd.s32 %v758, %v760
    %vm764 = vc.u32 %v758, %v760
    %v765 = vadd.s32 %v761, 1
    %v766 = vsel %vm764, %v765, %v761
    %v767 = vadd.s32 %v762, %v766
    %v768 = vadd.s32 %v767, 536870912
    %v769 = vshrl.u32 %v768, 30
    %v770 = vshll.u32 %v769, 30
    %v771 = vsub.s32 %v767, %v770
    %vm772 = vcmp.lt.s32.totalorder %v771, 0
    %v773 = vsub.s32 0, %v771
    %v774 = vsel %vm772, %v773, %v771
    %v775 = vclz %v774
    %v776 = vsub.s32 %v775, 2
    %vm777 = vcmp.gt.s32.totalorder 0, %v776
    %v778 = vsel %vm777, 0, %v776
    %v779 = vsub.s32 32, %v778
    %v780 = vshll.u32 %v771, %v778
    %v781 = vshrl.u32 %v763, %v779
    %v782 = vor.u32 %v780, %v781
    %v783 = vsub.s32 4294967266, %v778
    %v784 = vadd.s32 %v783, 127
    %v785 = vshll.u32 %v784, 23
    %v786 = vor.u32 4788187, %v785
    %v787 = vand.u32 2147483647, %v786
    %v789 = vcvt.s32.f32 %v782
    %v790 = vmul.f32 %v789, %v787
    %v791 = vxor.u32 %v790, 2147483648
    %v792 = vsel %vm709, %v791, %v790
    %v793 = vsub.s32 4, %v769
    %v794 = vsel %vm709, %v793, %v769
    %v795 = vsel %vm708, %v600, %v792
    %v796 = vsel %vm708, 0, %v794
    %v797 = vcosq.f32.pop %v795
    %v798 = vsinq.f32.pop %v795
    %vm799 = vweird.f32 %v600
    %v800 = vadd.s32 %v796, 3
    %v801 = vand.u32 %v800, 3
    %vm802 = vcmp.lt.s32.totalorder %v801, 2
    %vm803 = vcmp.eq.s32.totalorder %v801, 0
    %v804 = vxor.u32 %v798, 2147483648
    %v805 = vsel %vm803, %v797, %v804
    %vm806 = vcmp.eq.s32.totalorder %v801, 2
    %v807 = vxor.u32 %v797, 2147483648
    %v808 = vsel %vm806, %v807, %v798
    %v809 = vsel %vm802, %v805, %v808
    %v810 = vsel %vm799, nan, %v809
    %v811 = vand.u32 2147483647, %v601
    %vm812 = vcmp.le.f32.partialorder %v811, 0.7853982
    %vm813 = vcmp.lt.s32.totalorder %v601, 0
    %v814 = vand.u32 %v601, 2139095040
    %v815 = vshrl.u32 %v814, 23
    %v816 = vsub.s32 %v815, 127
    %v817 = vand.u32 2147483647, %v601
    %v818 = vand.u32 %v817, 8388607
    %v819 = vor.u32 %v818, 8388608
    %v820 = vsub.s32 0, %v819
    %v821 = vadd.s32 %v816, 1
    %vm822 = vcmp.gt.s32.totalorder %v821, 0
    %v823 = vsel %vm822, %v821, 0
    %v824 = vshrl.u32 %v823, 5
    %v825 = vand.u32 %v823, 31
    %v826 = vsub.s32 32, %v825
    %v827 = vshrl.u32 683565275, %v826
    %v828 = vshll.u32 683565275, %v825
    %v829 = vshrl.u32 2475754826, %v826
    %v830 = vor.u32 %v828, %v829
    %v831 = vshll.u32 2475754826, %v825
    %v832 = vshrl.u32 2131351028, %v826
    %v833 = vor.u32 %v831, %v832
    %v834 = vshll.u32 2131351028, %v825
    %v835 = vshrl.u32 2102212464, %v826
    %v836 = vor.u32 %v834, %v835
    %v837 = vshll.u32 2102212464, %v825
    %v838 = vshrl.u32 920167782, %v826
    %v839 = vor.u32 %v837, %v838
    %v840 = vshll.u32 920167782, %v825
    %v841 = vshrl.u32 1326507024, %v826
    %v842 = vor.u32 %v840, %v841
    %vm843 = vcmp.lt.s32.totalorder %v824, 1
    %vm844 = vcmp.lt.s32.totalorder %v824, 2
    %vm845 = vcmp.lt.s32.totalorder %v824, 3
    %vm846 = vcmp.lt.s32.totalorder %v824, 4
    %v847 = vsel %vm843, %v827, %v830
    %v848 = vsel %vm846, %v836, 2102212464
    %v849 = vsel %vm845, %v833, %v848
    %v850 = vsel %vm844, %v847, %v849
    %v851 = vsel %vm843, %v830, %v833
    %v852 = vsel %vm846, %v839, 920167782
    %v853 = vsel %vm845, %v836, %v852
    %v854 = vsel %vm844, %v851, %v853
    %v855 = vsel %vm843, %v833, %v836
    %v856 = vsel %vm846, %v842, 1326507024
    %v857 = vsel %vm845, %v839, %v856
    %v858 = vsel %vm844, %v855, %v857
    %v859 = vshll.u32 %v819, 8
    %v860 = vmul.u32.u64.compose %v859, %v858
    %v861 = vextract.low.u32 %v860
    %v862 = vextract.high.u32 %v860
    %v863 = vmul.u32.u64.compose %v859, %v854
    %v864 = vextract.low.u32 %v863
    %v865 = vextract.high.u32 %v863
    %v866 = vmul.u32 %v859, %v850
    %v867 = vadd.s32 %v862, %v864
    %vm868 = vc.u32 %v862, %v864
    %v869 = vadd.s32 %v865, 1
    %v870 = vsel %vm868, %v869, %v865
    %v871 = vadd.s32 %v866, %v870
    %v872 = vadd.s32 %v871, 536870912
    %v873 = vshrl.u32 %v872, 30
    %v874 = vshll.u32 %v873, 30
    %v875 = vsub.s32 %v871, %v874
    %vm876 = vcmp.lt.s32.totalorder %v875, 0
    %v877 = vsub.s32 0, %v875
    %v878 = vsel %vm876, %v877, %v875
    %v879 = vclz %v878
    %v880 = vsub.s32 %v879, 2
    %vm881 = vcmp.gt.s32.totalorder 0, %v880
    %v882 = vsel %vm881, 0, %v880
    %v883 = vsub.s32 32, %v882
    %v884 = vshll.u32 %v875, %v882
    %v885 = vshrl.u32 %v867, %v883
    %v886 = vor.u32 %v884, %v885
    %v887 = vsub.s32 4294967266, %v882
    %v888 = vadd.s32 %v887, 127
    %v889 = vshll.u32 %v888, 23
    %v890 = vor.u32 4788187, %v889
    %v891 = vand.u32 2147483647, %v890
    %v893 = vcvt.s32.f32 %v886
    %v894 = vmul.f32 %v893, %v891
    %v895 = vxor.u32 %v894, 2147483648
    %v896 = vsel %vm813, %v895, %v894
    %v897 = vsub.s32 4, %v873
    %v898 = vsel %vm813, %v897, %v873
    %v899 = vsel %vm812, %v601, %v896
    %v900 = vsel %vm812, 0, %v898
    %v901 = vcosq.f32.pop %v899
    %v902 = vsinq.f32.pop %v899
    %vm903 = vweird.f32 %v601
    %v904 = vadd.s32 %v900, 3
    %v905 = vand.u32 %v904, 3
    %vm906 = vcmp.lt.s32.totalorder %v905, 2
    %vm907 = vcmp.eq.s32.totalorder %v905, 0
    %v908 = vxor.u32 %v902, 2147483648
    %v909 = vsel %vm907, %v901, %v908
    %vm910 = vcmp.eq.s32.totalorder %v905, 2
    %v911 = vxor.u32 %v901, 2147483648
    %v912 = vsel %vm910, %v911, %v902
    %v913 = vsel %vm906, %v909, %v912
    %v914 = vsel %vm903, nan, %v913
    %v915 = vand.u32 2147483647, %v602
    %vm916 = vcmp.le.f32.partialorder %v915, 0.7853982
    %vm917 = vcmp.lt.s32.totalorder %v602, 0
    %v918 = vand.u32 %v602, 2139095040
    %v919 = vshrl.u32 %v918, 23
    %v920 = vsub.s32 %v919, 127
    %v921 = vand.u32 2147483647, %v602
    %v922 = vand.u32 %v921, 8388607
    %v923 = vor.u32 %v922, 8388608
    %v924 = vsub.s32 0, %v923
    %v925 = vadd.s32 %v920, 1
    %vm926 = vcmp.gt.s32.totalorder %v925, 0
    %v927 = vsel %vm926, %v925, 0
    %v928 = vshrl.u32 %v927, 5
    %v929 = vand.u32 %v927, 31
    %v930 = vsub.s32 32, %v929
    %v931 = vshrl.u32 683565275, %v930
    %v932 = vshll.u32 683565275, %v929
    %v933 = vshrl.u32 2475754826, %v930
    %v934 = vor.u32 %v932, %v933
    %v935 = vshll.u32 2475754826, %v929
    %v936 = vshrl.u32 2131351028, %v930
    %v937 = vor.u32 %v935, %v936
    %v938 = vshll.u32 2131351028, %v929
    %v939 = vshrl.u32 2102212464, %v930
    %v940 = vor.u32 %v938, %v939
    %v941 = vshll.u32 2102212464, %v929
    %v942 = vshrl.u32 920167782, %v930
    %v943 = vor.u32 %v941, %v942
    %v944 = vshll.u32 920167782, %v929
    %v945 = vshrl.u32 1326507024, %v930
    %v946 = vor.u32 %v944, %v945
    %vm947 = vcmp.lt.s32.totalorder %v928, 1
    %vm948 = vcmp.lt.s32.totalorder %v928, 2
    %vm949 = vcmp.lt.s32.totalorder %v928, 3
    %vm950 = vcmp.lt.s32.totalorder %v928, 4
    %v951 = vsel %vm947, %v931, %v934
    %v952 = vsel %vm950, %v940, 2102212464
    %v953 = vsel %vm949, %v937, %v952
    %v954 = vsel %vm948, %v951, %v953
    %v955 = vsel %vm947, %v934, %v937
    %v956 = vsel %vm950, %v943, 920167782
    %v957 = vsel %vm949, %v940, %v956
    %v958 = vsel %vm948, %v955, %v957
    %v959 = vsel %vm947, %v937, %v940
    %v960 = vsel %vm950, %v946, 1326507024
    %v961 = vsel %vm949, %v943, %v960
    %v962 = vsel %vm948, %v959, %v961
    %v963 = vshll.u32 %v923, 8
    %v964 = vmul.u32.u64.compose %v963, %v962
    %v965 = vextract.low.u32 %v964
    %v966 = vextract.high.u32 %v964
    %v967 = vmul.u32.u64.compose %v963, %v958
    %v968 = vextract.low.u32 %v967
    %v969 = vextract.high.u32 %v967
    %v970 = vmul.u32 %v963, %v954
    %v971 = vadd.s32 %v966, %v968
    %vm972 = vc.u32 %v966, %v968
    %v973 = vadd.s32 %v969, 1
    %v974 = vsel %vm972, %v973, %v969
    %v975 = vadd.s32 %v970, %v974
    %v976 = vadd.s32 %v975, 536870912
    %v977 = vshrl.u32 %v976, 30
    %v978 = vshll.u32 %v977, 30
    %v979 = vsub.s32 %v975, %v978
    %vm980 = vcmp.lt.s32.totalorder %v979, 0
    %v981 = vsub.s32 0, %v979
    %v982 = vsel %vm980, %v981, %v979
    %v983 = vclz %v982
    %v984 = vsub.s32 %v983, 2
    %vm985 = vcmp.gt.s32.totalorder 0, %v984
    %v986 = vsel %vm985, 0, %v984
    %v987 = vsub.s32 32, %v986
    %v988 = vshll.u32 %v979, %v986
    %v989 = vshrl.u32 %v971, %v987
    %v990 = vor.u32 %v988, %v989
    %v991 = vsub.s32 4294967266, %v986
    %v992 = vadd.s32 %v991, 127
    %v993 = vshll.u32 %v992, 23
    %v994 = vor.u32 4788187, %v993
    %v995 = vand.u32 2147483647, %v994
    %v997 = vcvt.s32.f32 %v990
    %v998 = vmul.f32 %v997, %v995
    %v999 = vxor.u32 %v998, 2147483648
    %v1000 = vsel %vm917, %v999, %v998
    %v1001 = vsub.s32 4, %v977
    %v1002 = vsel %vm917, %v1001, %v977
    %v1003 = vsel %vm916, %v602, %v1000
    %v1004 = vsel %vm916, 0, %v1002
    %v1005 = vcosq.f32.pop %v1003
    %v1006 = vsinq.f32.pop %v1003
    %vm1007 = vweird.f32 %v602
    %v1008 = vadd.s32 %v1004, 3
    %v1009 = vand.u32 %v1008, 3
    %vm1010 = vcmp.lt.s32.totalorder %v1009, 2
    %vm1011 = vcmp.eq.s32.totalorder %v1009, 0
    %v1012 = vxor.u32 %v1006, 2147483648
    %v1013 = vsel %vm1011, %v1005, %v1012
    %vm1014 = vcmp.eq.s32.totalorder %v1009, 2
    %v1015 = vxor.u32 %v1005, 2147483648
    %v1016 = vsel %vm1014, %v1015, %v1006
    %v1017 = vsel %vm1010, %v1013, %v1016
    %v1018 = vsel %vm1007, nan, %v1017
    %v1019 = vmul.f32 %v581, %v706
    %v1020 = vmul.f32 %v582, %v810
    %v1021 = vmul.f32 %v583, %v914
    %v1022 = vmul.f32 %v584, %v1018
    %v1023 = vadd.f32 %v576, %v1019
    %v1024 = vadd.f32 %v577, %v1020
    %v1025 = vadd.f32 %v578, %v1021
    %v1026 = vadd.f32 %v579, %v1022
    %v1027 = vld [vmem:[%s4 + $0x2] sm:$0x1]
    %v1028 = vld [vmem:[%s4 + $0x3] sm:$0x1]
    %v1029 = vstv %s79
    %v1030 = vmul.f32 %v1028, %v1029
    %v1031 = vadd.f32 %v1027, %v1030
    %v1032 = vld [vmem:[%s4 + $0x4] sm:$0x1]
    %v1033 = vld [vmem:[%s4 + $0x5] sm:$0x1]
    %v1034 = vmul.f32 %v1033, %v1029
    %v1035 = vadd.f32 %v1032, %v1034
    %v1036 = vlaneseq
    %v1037 = vshrl.u32 %v1036, 7
    %v1038 = vsub.s32 0, %v1037
    %v1039 = vrot.slane %v1031, %v1038
    %v1041 = vsel %vm82, %v122, 0
    %v1044 = vsel %vm82, %v123, 0
    %1046 = vmatprep.subr.mxu0 0.0
    %1047 = vmatpush1.msra.mxu0 %v572
    %1048 = vmatprep.subr.mxu0 0.0
    %1049 = vmatpush1.msra.mxu0 %v573
    %1050 = vmatprep.subr.mxu0 0.0
    %1051 = vmatpush1.msra.mxu0 %v574
    %1052 = vmatprep.subr.mxu0 0.0
    %1053 = vmatpush1.msra.mxu0 %v575
    %1054 = vmatprep.subr.mxu0 0.0
    %1055 = vmatpush1.msra.mxu0 0.0
    %1056 = vmatprep.subr.mxu0 0.0
    %1057 = vmatpush1.msra.mxu0 0.0
    %1058 = vmatprep.subr.mxu0 0.0
    %1059 = vmatpush1.msra.mxu0 0.0
    %1060 = vmatprep.subr.mxu0 0.0
    %1061 = vmatpush1.msra.mxu0 0.0
    %1062 = vmatprep.subr.mxu0 0.0
    %1063 = vmatpush1.msra.mxu0 0.0
    %1064 = vmatprep.subr.mxu0 0.0
    %1065 = vmatpush1.msra.mxu0 0.0
    %1066 = vmatprep.subr.mxu0 0.0
    %1067 = vmatpush1.msra.mxu0 0.0
    %1068 = vmatprep.subr.mxu0 0.0
    %1069 = vmatpush1.msra.mxu0 0.0
    %1070 = vmatprep.subr.mxu0 0.0
    %1071 = vmatpush1.msra.mxu0 0.0
    %1072 = vmatprep.subr.mxu0 0.0
    %1073 = vmatpush1.msra.mxu0 0.0
    %1074 = vmatprep.subr.mxu0 0.0
    %1075 = vmatpush1.msra.mxu0 0.0
    %1076 = vmatprep.subr.mxu0 0.0
    %1077 = vmatpush1.msra.mxu0 0.0
    %1078 = vmatprep.subr.mxu0 0.0
    %1079 = vmatpush1.msra.mxu0 0.0
    %1080 = vmatprep.subr.mxu0 0.0
    %1081 = vmatpush1.msra.mxu0 0.0
    %1082 = vmatprep.subr.mxu0 0.0
    %1083 = vmatpush1.msra.mxu0 0.0
    %1084 = vmatprep.subr.mxu0 0.0
    %1085 = vmatpush1.msra.mxu0 0.0
    %1086 = vmatprep.subr.mxu0 0.0
    %1087 = vmatpush1.msra.mxu0 0.0
    %1088 = vmatprep.subr.mxu0 0.0
    %1089 = vmatpush1.msra.mxu0 0.0
    %1090 = vmatprep.subr.mxu0 0.0
    %1091 = vmatpush1.msra.mxu0 0.0
    %1092 = vmatprep.subr.mxu0 0.0
    %1093 = vmatpush1.msra.mxu0 0.0
    %1094 = vmatprep.subr.mxu0 0.0
    %1095 = vmatpush1.msra.mxu0 0.0
    %1096 = vmatprep.subr.mxu0 0.0
    %1097 = vmatpush1.msra.mxu0 0.0
    %1098 = vmatprep.subr.mxu0 0.0
    %1099 = vmatpush1.msra.mxu0 0.0
    %1100 = vmatprep.subr.mxu0 0.0
    %1101 = vmatpush1.msra.mxu0 0.0
    %1102 = vmatprep.subr.mxu0 0.0
    %1103 = vmatpush1.msra.mxu0 0.0
    %1104 = vmatprep.subr.mxu0 0.0
    %1105 = vmatpush1.msra.mxu0 0.0
    %1106 = vmatprep.subr.mxu0 0.0
    %1107 = vmatpush1.msra.mxu0 0.0
    %1108 = vmatprep.subr.mxu0 0.0
    %1109 = vmatpush1.msra.mxu0 0.0
    %1110 = vmatprep.mubr.f32.mxu0 0.0
    %1111 = vmatmul.mubr.f32.gmra.mrb[0].mxu0 %v1041
    %v1112 = vpop.f32.mrb[0].mxu0
    %v1113 = vadd.f32 %v1039, %v1112
    %v1114 = vpop.f32.mrb[0].mxu0
    %1115 = vmatprep.mubr.f32.mxu0 0.0
    %1116 = vmatmul.mubr.f32.gmra.mrb[0].mxu0 %v1044
    %v1117 = vpop.f32.mrb[0].mxu0
    %v1118 = vadd.f32 %v1039, %v1117
    %v1119 = vpop.f32.mrb[0].mxu0
    %1120 = vdwg.mxu0
    %v1121 = vld [vmem:[%s1] sm:$0xff]
    %1123 = vrot.lane.b32.xlu0 %v1113, 96
    %v1124 = vpop.permute.xlu0 %1123
    %vm1125 = vcmask 64512
    %v1126 = vsel %vm1125, %v1113, 0
    %v1128 = vsel %vm1125, %v1124, 0
    %1130 = vmatprep.subr.mxu0 0.0
    %1131 = vmatpush1.xpose.msra.mxu0 %v1128
    %1132 = vmatprep.subr.mxu0 0.0
    %1133 = vmatpush1.xpose.msra.mxu0 0.0
    %1134 = vmatprep.subr.mxu0 0.0
    %1135 = vmatpush1.xpose.msra.mxu0 0.0
    %1136 = vmatprep.subr.mxu0 0.0
    %1137 = vmatpush1.xpose.msra.mxu0 0.0
    %1138 = vmatprep.subr.mxu0 0.0
    %1139 = vmatpush1.xpose.msra.mxu0 0.0
    %1140 = vmatprep.subr.mxu0 0.0
    %1141 = vmatpush1.xpose.msra.mxu0 0.0
    %1142 = vmatprep.subr.mxu0 0.0
    %1143 = vmatpush1.xpose.msra.mxu0 0.0
    %1144 = vmatprep.subr.mxu0 0.0
    %1145 = vmatpush1.xpose.msra.mxu0 0.0
    %1146 = vmatprep.subr.mxu0 0.0
    %1147 = vmatpush1.xpose.msra.mxu0 0.0
    %1148 = vmatprep.subr.mxu0 0.0
    %1149 = vmatpush1.xpose.msra.mxu0 0.0
    %1150 = vmatprep.subr.mxu0 0.0
    %1151 = vmatpush1.xpose.msra.mxu0 0.0
    %1152 = vmatprep.subr.mxu0 0.0
    %1153 = vmatpush1.xpose.msra.mxu0 0.0
    %1154 = vmatprep.subr.mxu0 0.0
    %1155 = vmatpush1.xpose.msra.mxu0 0.0
    %1156 = vmatprep.subr.mxu0 0.0
    %1157 = vmatpush1.xpose.msra.mxu0 0.0
    %1158 = vmatprep.subr.mxu0 0.0
    %1159 = vmatpush1.xpose.msra.mxu0 0.0
    %1160 = vmatprep.subr.mxu0 0.0
    %1161 = vmatpush1.xpose.msra.mxu0 0.0
    %1162 = vmatprep.subr.mxu0 0.0
    %1163 = vmatpush1.xpose.msra.mxu0 0.0
    %1164 = vmatprep.subr.mxu0 0.0
    %1165 = vmatpush1.xpose.msra.mxu0 0.0
    %1166 = vmatprep.subr.mxu0 0.0
    %1167 = vmatpush1.xpose.msra.mxu0 0.0
    %1168 = vmatprep.subr.mxu0 0.0
    %1169 = vmatpush1.xpose.msra.mxu0 0.0
    %1170 = vmatprep.subr.mxu0 0.0
    %1171 = vmatpush1.xpose.msra.mxu0 0.0
    %1172 = vmatprep.subr.mxu0 0.0
    %1173 = vmatpush1.xpose.msra.mxu0 0.0
    %1174 = vmatprep.subr.mxu0 0.0
    %1175 = vmatpush1.xpose.msra.mxu0 0.0
    %1176 = vmatprep.subr.mxu0 0.0
    %1177 = vmatpush1.xpose.msra.mxu0 0.0
    %1178 = vmatprep.subr.mxu0 0.0
    %1179 = vmatpush1.xpose.msra.mxu0 0.0
    %1180 = vmatprep.subr.mxu0 0.0
    %1181 = vmatpush1.xpose.msra.mxu0 0.0
    %1182 = vmatprep.subr.mxu0 0.0
    %1183 = vmatpush1.xpose.msra.mxu0 0.0
    %1184 = vmatprep.subr.mxu0 0.0
    %1185 = vmatpush1.xpose.msra.mxu0 0.0
    %1186 = vmatprep.subr.mxu0 0.0
    %1187 = vmatpush1.xpose.msra.mxu0 0.0
    %1188 = vmatprep.subr.mxu0 0.0
    %1189 = vmatpush1.xpose.msra.mxu0 0.0
    %1190 = vmatprep.subr.mxu0 0.0
    %1191 = vmatpush1.xpose.msra.mxu0 0.0
    %1192 = vmatprep.subr.mxu0 0.0
    %1193 = vmatpush1.xpose.msra.mxu0 0.0
    %1194 = vmatprep.mubr.f32.mxu0 0.0
    %1195 = vmatmul.mubr.f32.gmra.mrb[0].mxu0 %v1126
    %v1196 = vpop.f32.mrb[0].mxu0
    %v1197 = vadd.f32 %v1121, %v1196
    %v1198 = vpop.f32.mrb[0].mxu0
    %1199 = vdwg.mxu0
    %v1200 = vsel %vm1125, %v1197, -inf
    %1201 = vmax.xlane.f32.xlu0 %v1200
    %v1202 = vpop.xlane.xlu0 %1201
    %v1203 = vsub.f32 %v1197, %v1202
    %v1204 = vmul.f32 %v1203, 1.442695
    %v1205 = vpow.pop %v1204
    %v1206 = vsel %vm1125, %v1205, 0.0
    %1207 = vadd.xlane.f32.xlu0 %v1206
    %v1208 = vpop.xlane.xlu0 %1207
    %v1209 = vrcp.pop %v1208
    %v1210 = vmul.f32 %v1205, %v1209
    %1211 = vrot.lane.b32.xlu0 %v1113, 64
    %v1212 = vpop.permute.xlu0 %1211
    %v1215 = vsel %vm1125, %v1210, 0
    %1217 = vmatprep.subr.mxu0 0.0
    %1218 = vmatpush1.msra.mxu0 %v1212
    %1219 = vmatprep.subr.mxu0 0.0
    %1220 = vmatpush1.msra.mxu0 0.0
    %1221 = vmatprep.subr.mxu0 0.0
    %1222 = vmatpush1.msra.mxu0 0.0
    %1223 = vmatprep.subr.mxu0 0.0
    %1224 = vmatpush1.msra.mxu0 0.0
    %1225 = vmatprep.subr.mxu0 0.0
    %1226 = vmatpush1.msra.mxu0 0.0
    %1227 = vmatprep.subr.mxu0 0.0
    %1228 = vmatpush1.msra.mxu0 0.0
    %1229 = vmatprep.subr.mxu0 0.0
    %1230 = vmatpush1.msra.mxu0 0.0
    %1231 = vmatprep.subr.mxu0 0.0
    %1232 = vmatpush1.msra.mxu0 0.0
    %1233 = vmatprep.subr.mxu0 0.0
    %1234 = vmatpush1.msra.mxu0 0.0
    %1235 = vmatprep.subr.mxu0 0.0
    %1236 = vmatpush1.msra.mxu0 0.0
    %1237 = vmatprep.subr.mxu0 0.0
    %1238 = vmatpush1.msra.mxu0 0.0
    %1239 = vmatprep.subr.mxu0 0.0
    %1240 = vmatpush1.msra.mxu0 0.0
    %1241 = vmatprep.subr.mxu0 0.0
    %1242 = vmatpush1.msra.mxu0 0.0
    %1243 = vmatprep.subr.mxu0 0.0
    %1244 = vmatpush1.msra.mxu0 0.0
    %1245 = vmatprep.subr.mxu0 0.0
    %1246 = vmatpush1.msra.mxu0 0.0
    %1247 = vmatprep.subr.mxu0 0.0
    %1248 = vmatpush1.msra.mxu0 0.0
    %1249 = vmatprep.subr.mxu0 0.0
    %1250 = vmatpush1.msra.mxu0 0.0
    %1251 = vmatprep.subr.mxu0 0.0
    %1252 = vmatpush1.msra.mxu0 0.0
    %1253 = vmatprep.subr.mxu0 0.0
    %1254 = vmatpush1.msra.mxu0 0.0
    %1255 = vmatprep.subr.mxu0 0.0
    %1256 = vmatpush1.msra.mxu0 0.0
    %1257 = vmatprep.subr.mxu0 0.0
    %1258 = vmatpush1.msra.mxu0 0.0
    %1259 = vmatprep.subr.mxu0 0.0
    %1260 = vmatpush1.msra.mxu0 0.0
    %1261 = vmatprep.subr.mxu0 0.0
    %1262 = vmatpush1.msra.mxu0 0.0
    %1263 = vmatprep.subr.mxu0 0.0
    %1264 = vmatpush1.msra.mxu0 0.0
    %1265 = vmatprep.subr.mxu0 0.0
    %1266 = vmatpush1.msra.mxu0 0.0
    %1267 = vmatprep.subr.mxu0 0.0
    %1268 = vmatpush1.msra.mxu0 0.0
    %1269 = vmatprep.subr.mxu0 0.0
    %1270 = vmatpush1.msra.mxu0 0.0
    %1271 = vmatprep.subr.mxu0 0.0
    %1272 = vmatpush1.msra.mxu0 0.0
    %1273 = vmatprep.subr.mxu0 0.0
    %1274 = vmatpush1.msra.mxu0 0.0
    %1275 = vmatprep.subr.mxu0 0.0
    %1276 = vmatpush1.msra.mxu0 0.0
    %1277 = vmatprep.subr.mxu0 0.0
    %1278 = vmatpush1.msra.mxu0 0.0
    %1279 = vmatprep.subr.mxu0 0.0
    %1280 = vmatpush1.msra.mxu0 0.0
    %1281 = vmatprep.mubr.f32.mxu0 0.0
    %1282 = vmatmul.mubr.f32.gmra.mrb[0].mxu0 %v1215
    %v1283 = vpop.f32.mrb[0].mxu0
    %v1284 = vadd.f32 0.0, %v1283
    %v1285 = vpop.f32.mrb[0].mxu0
    %1286 = vdwg.mxu0
    %1287 = vst.msk [vmem:[#allocation2] sm:$0xff] %vm1125, %v1284
    %1288 = vrot.lane.b32.xlu0 %v1113, 120
    %v1289 = vpop.permute.xlu0 %1288
    %1290 = vrot.lane.b32.xlu0 %v1113, 88
    %v1291 = vpop.permute.xlu0 %1290
    %v1292 = vsel %vm1125, %v1289, 0
    %v1294 = vsel %vm1125, %v1291, 0
    %1296 = vmatprep.subr.mxu0 0.0
    %1297 = vmatpush1.xpose.msra.mxu0 %v1294
    %1298 = vmatprep.subr.mxu0 0.0
    %1299 = vmatpush1.xpose.msra.mxu0 0.0
    %1300 = vmatprep.subr.mxu0 0.0
    %1301 = vmatpush1.xpose.msra.mxu0 0.0
    %1302 = vmatprep.subr.mxu0 0.0
    %1303 = vmatpush1.xpose.msra.mxu0 0.0
    %1304 = vmatprep.subr.mxu0 0.0
    %1305 = vmatpush1.xpose.msra.mxu0 0.0
    %1306 = vmatprep.subr.mxu0 0.0
    %1307 = vmatpush1.xpose.msra.mxu0 0.0
    %1308 = vmatprep.subr.mxu0 0.0
    %1309 = vmatpush1.xpose.msra.mxu0 0.0
    %1310 = vmatprep.subr.mxu0 0.0
    %1311 = vmatpush1.xpose.msra.mxu0 0.0
    %1312 = vmatprep.subr.mxu0 0.0
    %1313 = vmatpush1.xpose.msra.mxu0 0.0
    %1314 = vmatprep.subr.mxu0 0.0
    %1315 = vmatpush1.xpose.msra.mxu0 0.0
    %1316 = vmatprep.subr.mxu0 0.0
    %1317 = vmatpush1.xpose.msra.mxu0 0.0
    %1318 = vmatprep.subr.mxu0 0.0
    %1319 = vmatpush1.xpose.msra.mxu0 0.0
    %1320 = vmatprep.subr.mxu0 0.0
    %1321 = vmatpush1.xpose.msra.mxu0 0.0
    %1322 = vmatprep.subr.mxu0 0.0
    %1323 = vmatpush1.xpose.msra.mxu0 0.0
    %1324 = vmatprep.subr.mxu0 0.0
    %1325 = vmatpush1.xpose.msra.mxu0 0.0
    %1326 = vmatprep.subr.mxu0 0.0
    %1327 = vmatpush1.xpose.msra.mxu0 0.0
    %1328 = vmatprep.subr.mxu0 0.0
    %1329 = vmatpush1.xpose.msra.mxu0 0.0
    %1330 = vmatprep.subr.mxu0 0.0
    %1331 = vmatpush1.xpose.msra.mxu0 0.0
    %1332 = vmatprep.subr.mxu0 0.0
    %1333 = vmatpush1.xpose.msra.mxu0 0.0
    %1334 = vmatprep.subr.mxu0 0.0
    %1335 = vmatpush1.xpose.msra.mxu0 0.0
    %1336 = vmatprep.subr.mxu0 0.0
    %1337 = vmatpush1.xpose.msra.mxu0 0.0
    %1338 = vmatprep.subr.mxu0 0.0
    %1339 = vmatpush1.xpose.msra.mxu0 0.0
    %1340 = vmatprep.subr.mxu0 0.0
    %1341 = vmatpush1.xpose.msra.mxu0 0.0
    %1342 = vmatprep.subr.mxu0 0.0
    %1343 = vmatpush1.xpose.msra.mxu0 0.0
    %1344 = vmatprep.subr.mxu0 0.0
    %1345 = vmatpush1.xpose.msra.mxu0 0.0
    %1346 = vmatprep.subr.mxu0 0.0
    %1347 = vmatpush1.xpose.msra.mxu0 0.0
    %1348 = vmatprep.subr.mxu0 0.0
    %1349 = vmatpush1.xpose.msra.mxu0 0.0
    %1350 = vmatprep.subr.mxu0 0.0
    %1351 = vmatpush1.xpose.msra.mxu0 0.0
    %1352 = vmatprep.subr.mxu0 0.0
    %1353 = vmatpush1.xpose.msra.mxu0 0.0
    %1354 = vmatprep.subr.mxu0 0.0
    %1355 = vmatpush1.xpose.msra.mxu0 0.0
    %1356 = vmatprep.subr.mxu0 0.0
    %1357 = vmatpush1.xpose.msra.mxu0 0.0
    %1358 = vmatprep.subr.mxu0 0.0
    %1359 = vmatpush1.xpose.msra.mxu0 0.0
    %1360 = vmatprep.mubr.f32.mxu0 0.0
    %1361 = vmatmul.mubr.f32.gmra.mrb[0].mxu0 %v1292
    %v1362 = vpop.f32.mrb[0].mxu0
    %v1363 = vadd.f32 %v1121, %v1362
    %v1364 = vpop.f32.mrb[0].mxu0
    %1365 = vdwg.mxu0
    %v1366 = vsel %vm1125, %v1363, -inf
    %1367 = vmax.xlane.f32.xlu0 %v1366
    %v1368 = vpop.xlane.xlu0 %1367
    %v1369 = vsub.f32 %v1363, %v1368
    %v1370 = vmul.f32 %v1369, 1.442695
    %v1371 = vpow.pop %v1370
    %v1372 = vsel %vm1125, %v1371, 0.0
    %1373 = vadd.xlane.f32.xlu0 %v1372
    %v1374 = vpop.xlane.xlu0 %1373
    %v1375 = vrcp.pop %v1374
    %v1376 = vmul.f32 %v1371, %v1375
    %1377 = vrot.lane.b32.xlu0 %v1113, 56
    %v1378 = vpop.permute.xlu0 %1377
    %v1381 = vsel %vm1125, %v1376, 0
    %1383 = vmatprep.subr.mxu0 0.0
    %1384 = vmatpush1.msra.mxu0 %v1378
    %1385 = vmatprep.subr.mxu0 0.0
    %1386 = vmatpush1.msra.mxu0 0.0
    %1387 = vmatprep.subr.mxu0 0.0
    %1388 = vmatpush1.msra.mxu0 0.0
    %1389 = vmatprep.subr.mxu0 0.0
    %1390 = vmatpush1.msra.mxu0 0.0
    %1391 = vmatprep.subr.mxu0 0.0
    %1392 = vmatpush1.msra.mxu0 0.0
    %1393 = vmatprep.subr.mxu0 0.0
    %1394 = vmatpush1.msra.mxu0 0.0
    %1395 = vmatprep.subr.mxu0 0.0
    %1396 = vmatpush1.msra.mxu0 0.0
    %1397 = vmatprep.subr.mxu0 0.0
    %1398 = vmatpush1.msra.mxu0 0.0
    %1399 = vmatprep.subr.mxu0 0.0
    %1400 = vmatpush1.msra.mxu0 0.0
    %1401 = vmatprep.subr.mxu0 0.0
    %1402 = vmatpush1.msra.mxu0 0.0
    %1403 = vmatprep.subr.mxu0 0.0
    %1404 = vmatpush1.msra.mxu0 0.0
    %1405 = vmatprep.subr.mxu0 0.0
    %1406 = vmatpush1.msra.mxu0 0.0
    %1407 = vmatprep.subr.mxu0 0.0
    %1408 = vmatpush1.msra.mxu0 0.0
    %1409 = vmatprep.subr.mxu0 0.0
    %1410 = vmatpush1.msra.mxu0 0.0
    %1411 = vmatprep.subr.mxu0 0.0
    %1412 = vmatpush1.msra.mxu0 0.0
    %1413 = vmatprep.subr.mxu0 0.0
    %1414 = vmatpush1.msra.mxu0 0.0
    %1415 = vmatprep.subr.mxu0 0.0
    %1416 = vmatpush1.msra.mxu0 0.0
    %1417 = vmatprep.subr.mxu0 0.0
    %1418 = vmatpush1.msra.mxu0 0.0
    %1419 = vmatprep.subr.mxu0 0.0
    %1420 = vmatpush1.msra.mxu0 0.0
    %1421 = vmatprep.subr.mxu0 0.0
    %1422 = vmatpush1.msra.mxu0 0.0
    %1423 = vmatprep.subr.mxu0 0.0
    %1424 = vmatpush1.msra.mxu0 0.0
    %1425 = vmatprep.subr.mxu0 0.0
    %1426 = vmatpush1.msra.mxu0 0.0
    %1427 = vmatprep.subr.mxu0 0.0
    %1428 = vmatpush1.msra.mxu0 0.0
    %1429 = vmatprep.subr.mxu0 0.0
    %1430 = vmatpush1.msra.mxu0 0.0
    %1431 = vmatprep.subr.mxu0 0.0
    %1432 = vmatpush1.msra.mxu0 0.0
    %1433 = vmatprep.subr.mxu0 0.0
    %1434 = vmatpush1.msra.mxu0 0.0
    %1435 = vmatprep.subr.mxu0 0.0
    %1436 = vmatpush1.msra.mxu0 0.0
    %1437 = vmatprep.subr.mxu0 0.0
    %1438 = vmatpush1.msra.mxu0 0.0
    %1439 = vmatprep.subr.mxu0 0.0
    %1440 = vmatpush1.msra.mxu0 0.0
    %1441 = vmatprep.subr.mxu0 0.0
    %1442 = vmatpush1.msra.mxu0 0.0
    %1443 = vmatprep.subr.mxu0 0.0
    %1444 = vmatpush1.msra.mxu0 0.0
    %1445 = vmatprep.subr.mxu0 0.0
    %1446 = vmatpush1.msra.mxu0 0.0
    %1447 = vmatprep.mubr.f32.mxu0 0.0
    %1448 = vmatmul.mubr.f32.gmra.mrb[0].mxu0 %v1381
    %v1449 = vpop.f32.mrb[0].mxu0
    %v1450 = vadd.f32 0.0, %v1449
    %v1451 = vpop.f32.mrb[0].mxu0
    %1452 = vdwg.mxu0
    %1454 = vrot.lane.b32.xlu0 %v1450, 8
    %v1455 = vpop.permute.xlu0 %1454
    %vm1457 = vcmask 130112
    %1458 = vst.msk [vmem:[#allocation2] sm:$0xff] %vm1457, %v1455
    %1459 = vrot.lane.b32.xlu0 %v1113, 112
    %v1460 = vpop.permute.xlu0 %1459
    %1461 = vrot.lane.b32.xlu0 %v1113, 80
    %v1462 = vpop.permute.xlu0 %1461
    %v1463 = vsel %vm1125, %v1460, 0
    %v1465 = vsel %vm1125, %v1462, 0
    %1467 = vmatprep.subr.mxu0 0.0
    %1468 = vmatpush1.xpose.msra.mxu0 %v1465
    %1469 = vmatprep.subr.mxu0 0.0
    %1470 = vmatpush1.xpose.msra.mxu0 0.0
    %1471 = vmatprep.subr.mxu0 0.0
    %1472 = vmatpush1.xpose.msra.mxu0 0.0
    %1473 = vmatprep.subr.mxu0 0.0
    %1474 = vmatpush1.xpose.msra.mxu0 0.0
    %1475 = vmatprep.subr.mxu0 0.0
    %1476 = vmatpush1.xpose.msra.mxu0 0.0
    %1477 = vmatprep.subr.mxu0 0.0
    %1478 = vmatpush1.xpose.msra.mxu0 0.0
    %1479 = vmatprep.subr.mxu0 0.0
    %1480 = vmatpush1.xpose.msra.mxu0 0.0
    %1481 = vmatprep.subr.mxu0 0.0
    %1482 = vmatpush1.xpose.msra.mxu0 0.0
    %1483 = vmatprep.subr.mxu0 0.0
    %1484 = vmatpush1.xpose.msra.mxu0 0.0
    %1485 = vmatprep.subr.mxu0 0.0
    %1486 = vmatpush1.xpose.msra.mxu0 0.0
    %1487 = vmatprep.subr.mxu0 0.0
    %1488 = vmatpush1.xpose.msra.mxu0 0.0
    %1489 = vmatprep.subr.mxu0 0.0
    %1490 = vmatpush1.xpose.msra.mxu0 0.0
    %1491 = vmatprep.subr.mxu0 0.0
    %1492 = vmatpush1.xpose.msra.mxu0 0.0
    %1493 = vmatprep.subr.mxu0 0.0
    %1494 = vmatpush1.xpose.msra.mxu0 0.0
    %1495 = vmatprep.subr.mxu0 0.0
    %1496 = vmatpush1.xpose.msra.mxu0 0.0
    %1497 = vmatprep.subr.mxu0 0.0
    %1498 = vmatpush1.xpose.msra.mxu0 0.0
    %1499 = vmatprep.subr.mxu0 0.0
    %1500 = vmatpush1.xpose.msra.mxu0 0.0
    %1501 = vmatprep.subr.mxu0 0.0
    %1502 = vmatpush1.xpose.msra.mxu0 0.0
    %1503 = vmatprep.subr.mxu0 0.0
    %1504 = vmatpush1.xpose.msra.mxu0 0.0
    %1505 = vmatprep.subr.mxu0 0.0
    %1506 = vmatpush1.xpose.msra.mxu0 0.0
    %1507 = vmatprep.subr.mxu0 0.0
    %1508 = vmatpush1.xpose.msra.mxu0 0.0
    %1509 = vmatprep.subr.mxu0 0.0
    %1510 = vmatpush1.xpose.msra.mxu0 0.0
    %1511 = vmatprep.subr.mxu0 0.0
    %1512 = vmatpush1.xpose.msra.mxu0 0.0
    %1513 = vmatprep.subr.mxu0 0.0
    %1514 = vmatpush1.xpose.msra.mxu0 0.0
    %1515 = vmatprep.subr.mxu0 0.0
    %1516 = vmatpush1.xpose.msra.mxu0 0.0
    %1517 = vmatprep.subr.mxu0 0.0
    %1518 = vmatpush1.xpose.msra.mxu0 0.0
    %1519 = vmatprep.subr.mxu0 0.0
    %1520 = vmatpush1.xpose.msra.mxu0 0.0
    %1521 = vmatprep.subr.mxu0 0.0
    %1522 = vmatpush1.xpose.msra.mxu0 0.0
    %1523 = vmatprep.subr.mxu0 0.0
    %1524 = vmatpush1.xpose.msra.mxu0 0.0
    %1525 = vmatprep.subr.mxu0 0.0
    %1526 = vmatpush1.xpose.msra.mxu0 0.0
    %1527 = vmatprep.subr.mxu0 0.0
    %1528 = vmatpush1.xpose.msra.mxu0 0.0
    %1529 = vmatprep.subr.mxu0 0.0
    %1530 = vmatpush1.xpose.msra.mxu0 0.0
    %1531 = vmatprep.mubr.f32.mxu0 0.0
    %1532 = vmatmul.mubr.f32.gmra.mrb[0].mxu0 %v1463
    %v1533 = vpop.f32.mrb[0].mxu0
    %v1534 = vadd.f32 %v1121, %v1533
    %v1535 = vpop.f32.mrb[0].mxu0
    %1536 = vdwg.mxu0
    %v1537 = vsel %vm1125, %v1534, -inf
    %1538 = vmax.xlane.f32.xlu0 %v1537
    %v1539 = vpop.xlane.xlu0 %1538
    %v1540 = vsub.f32 %v1534, %v1539
    %v1541 = vmul.f32 %v1540, 1.442695
    %v1542 = vpow.pop %v1541
    %v1543 = vsel %vm1125, %v1542, 0.0
    %1544 = vadd.xlane.f32.xlu0 %v1543
    %v1545 = vpop.xlane.xlu0 %1544
    %v1546 = vrcp.pop %v1545
    %v1547 = vmul.f32 %v1542, %v1546
    %1548 = vrot.lane.b32.xlu0 %v1113, 48
    %v1549 = vpop.permute.xlu0 %1548
    %v1552 = vsel %vm1125, %v1547, 0
    %1554 = vmatprep.subr.mxu0 0.0
    %1555 = vmatpush1.msra.mxu0 %v1549
    %1556 = vmatprep.subr.mxu0 0.0
    %1557 = vmatpush1.msra.mxu0 0.0
    %1558 = vmatprep.subr.mxu0 0.0
    %1559 = vmatpush1.msra.mxu0 0.0
    %1560 = vmatprep.subr.mxu0 0.0
    %1561 = vmatpush1.msra.mxu0 0.0
    %1562 = vmatprep.subr.mxu0 0.0
    %1563 = vmatpush1.msra.mxu0 0.0
    %1564 = vmatprep.subr.mxu0 0.0
    %1565 = vmatpush1.msra.mxu0 0.0
    %1566 = vmatprep.subr.mxu0 0.0
    %1567 = vmatpush1.msra.mxu0 0.0
    %1568 = vmatprep.subr.mxu0 0.0
    %1569 = vmatpush1.msra.mxu0 0.0
    %1570 = vmatprep.subr.mxu0 0.0
    %1571 = vmatpush1.msra.mxu0 0.0
    %1572 = vmatprep.subr.mxu0 0.0
    %1573 = vmatpush1.msra.mxu0 0.0
    %1574 = vmatprep.subr.mxu0 0.0
    %1575 = vmatpush1.msra.mxu0 0.0
    %1576 = vmatprep.subr.mxu0 0.0
    %1577 = vmatpush1.msra.mxu0 0.0
    %1578 = vmatprep.subr.mxu0 0.0
    %1579 = vmatpush1.msra.mxu0 0.0
    %1580 = vmatprep.subr.mxu0 0.0
    %1581 = vmatpush1.msra.mxu0 0.0
    %1582 = vmatprep.subr.mxu0 0.0
    %1583 = vmatpush1.msra.mxu0 0.0
    %1584 = vmatprep.subr.mxu0 0.0
    %1585 = vmatpush1.msra.mxu0 0.0
    %1586 = vmatprep.subr.mxu0 0.0
    %1587 = vmatpush1.msra.mxu0 0.0
    %1588 = vmatprep.subr.mxu0 0.0
    %1589 = vmatpush1.msra.mxu0 0.0
    %1590 = vmatprep.subr.mxu0 0.0
    %1591 = vmatpush1.msra.mxu0 0.0
    %1592 = vmatprep.subr.mxu0 0.0
    %1593 = vmatpush1.msra.mxu0 0.0
    %1594 = vmatprep.subr.mxu0 0.0
    %1595 = vmatpush1.msra.mxu0 0.0
    %1596 = vmatprep.subr.mxu0 0.0
    %1597 = vmatpush1.msra.mxu0 0.0
    %1598 = vmatprep.subr.mxu0 0.0
    %1599 = vmatpush1.msra.mxu0 0.0
    %1600 = vmatprep.subr.mxu0 0.0
    %1601 = vmatpush1.msra.mxu0 0.0
    %1602 = vmatprep.subr.mxu0 0.0
    %1603 = vmatpush1.msra.mxu0 0.0
    %1604 = vmatprep.subr.mxu0 0.0
    %1605 = vmatpush1.msra.mxu0 0.0
    %1606 = vmatprep.subr.mxu0 0.0
    %1607 = vmatpush1.msra.mxu0 0.0
    %1608 = vmatprep.subr.mxu0 0.0
    %1609 = vmatpush1.msra.mxu0 0.0
    %1610 = vmatprep.subr.mxu0 0.0
    %1611 = vmatpush1.msra.mxu0 0.0
    %1612 = vmatprep.subr.mxu0 0.0
    %1613 = vmatpush1.msra.mxu0 0.0
    %1614 = vmatprep.subr.mxu0 0.0
    %1615 = vmatpush1.msra.mxu0 0.0
    %1616 = vmatprep.subr.mxu0 0.0
    %1617 = vmatpush1.msra.mxu0 0.0
    %1618 = vmatprep.mubr.f32.mxu0 0.0
    %1619 = vmatmul.mubr.f32.gmra.mrb[0].mxu0 %v1552
    %v1620 = vpop.f32.mrb[0].mxu0
    %v1621 = vadd.f32 0.0, %v1620
    %v1622 = vpop.f32.mrb[0].mxu0
    %1623 = vdwg.mxu0
    %1625 = vrot.lane.b32.xlu0 %v1621, 16
    %v1626 = vpop.permute.xlu0 %1625
    %vm1628 = vcmask 195712
    %1629 = vst.msk [vmem:[#allocation2] sm:$0xff] %vm1628, %v1626
    %1630 = vrot.lane.b32.xlu0 %v1113, 104
    %v1631 = vpop.permute.xlu0 %1630
    %1632 = vrot.lane.b32.xlu0 %v1113, 72
    %v1633 = vpop.permute.xlu0 %1632
    %v1634 = vsel %vm1125, %v1631, 0
    %v1636 = vsel %vm1125, %v1633, 0
    %1638 = vmatprep.subr.mxu0 0.0
    %1639 = vmatpush1.xpose.msra.mxu0 %v1636
    %1640 = vmatprep.subr.mxu0 0.0
    %1641 = vmatpush1.xpose.msra.mxu0 0.0
    %1642 = vmatprep.subr.mxu0 0.0
    %1643 = vmatpush1.xpose.msra.mxu0 0.0
    %1644 = vmatprep.subr.mxu0 0.0
    %1645 = vmatpush1.xpose.msra.mxu0 0.0
    %1646 = vmatprep.subr.mxu0 0.0
    %1647 = vmatpush1.xpose.msra.mxu0 0.0
    %1648 = vmatprep.subr.mxu0 0.0
    %1649 = vmatpush1.xpose.msra.mxu0 0.0
    %1650 = vmatprep.subr.mxu0 0.0
    %1651 = vmatpush1.xpose.msra.mxu0 0.0
    %1652 = vmatprep.subr.mxu0 0.0
    %1653 = vmatpush1.xpose.msra.mxu0 0.0
    %1654 = vmatprep.subr.mxu0 0.0
    %1655 = vmatpush1.xpose.msra.mxu0 0.0
    %1656 = vmatprep.subr.mxu0 0.0
    %1657 = vmatpush1.xpose.msra.mxu0 0.0
    %1658 = vmatprep.subr.mxu0 0.0
    %1659 = vmatpush1.xpose.msra.mxu0 0.0
    %1660 = vmatprep.subr.mxu0 0.0
    %1661 = vmatpush1.xpose.msra.mxu0 0.0
    %1662 = vmatprep.subr.mxu0 0.0
    %1663 = vmatpush1.xpose.msra.mxu0 0.0
    %1664 = vmatprep.subr.mxu0 0.0
    %1665 = vmatpush1.xpose.msra.mxu0 0.0
    %1666 = vmatprep.subr.mxu0 0.0
    %1667 = vmatpush1.xpose.msra.mxu0 0.0
    %1668 = vmatprep.subr.mxu0 0.0
    %1669 = vmatpush1.xpose.msra.mxu0 0.0
    %1670 = vmatprep.subr.mxu0 0.0
    %1671 = vmatpush1.xpose.msra.mxu0 0.0
    %1672 = vmatprep.subr.mxu0 0.0
    %1673 = vmatpush1.xpose.msra.mxu0 0.0
    %1674 = vmatprep.subr.mxu0 0.0
    %1675 = vmatpush1.xpose.msra.mxu0 0.0
    %1676 = vmatprep.subr.mxu0 0.0
    %1677 = vmatpush1.xpose.msra.mxu0 0.0
    %1678 = vmatprep.subr.mxu0 0.0
    %1679 = vmatpush1.xpose.msra.mxu0 0.0
    %1680 = vmatprep.subr.mxu0 0.0
    %1681 = vmatpush1.xpose.msra.mxu0 0.0
    %1682 = vmatprep.subr.mxu0 0.0
    %1683 = vmatpush1.xpose.msra.mxu0 0.0
    %1684 = vmatprep.subr.mxu0 0.0
    %1685 = vmatpush1.xpose.msra.mxu0 0.0
    %1686 = vmatprep.subr.mxu0 0.0
    %1687 = vmatpush1.xpose.msra.mxu0 0.0
    %1688 = vmatprep.subr.mxu0 0.0
    %1689 = vmatpush1.xpose.msra.mxu0 0.0
    %1690 = vmatprep.subr.mxu0 0.0
    %1691 = vmatpush1.xpose.msra.mxu0 0.0
    %1692 = vmatprep.subr.mxu0 0.0
    %1693 = vmatpush1.xpose.msra.mxu0 0.0
    %1694 = vmatprep.subr.mxu0 0.0
    %1695 = vmatpush1.xpose.msra.mxu0 0.0
    %1696 = vmatprep.subr.mxu0 0.0
    %1697 = vmatpush1.xpose.msra.mxu0 0.0
    %1698 = vmatprep.subr.mxu0 0.0
    %1699 = vmatpush1.xpose.msra.mxu0 0.0
    %1700 = vmatprep.subr.mxu0 0.0
    %1701 = vmatpush1.xpose.msra.mxu0 0.0
    %1702 = vmatprep.mubr.f32.mxu0 0.0
    %1703 = vmatmul.mubr.f32.gmra.mrb[0].mxu0 %v1634
    %v1704 = vpop.f32.mrb[0].mxu0
    %v1705 = vadd.f32 %v1121, %v1704
    %v1706 = vpop.f32.mrb[0].mxu0
    %1707 = vdwg.mxu0
    %v1708 = vsel %vm1125, %v1705, -inf
    %1709 = vmax.xlane.f32.xlu0 %v1708
    %v1710 = vpop.xlane.xlu0 %1709
    %v1711 = vsub.f32 %v1705, %v1710
    %v1712 = vmul.f32 %v1711, 1.442695
    %v1713 = vpow.pop %v1712
    %v1714 = vsel %vm1125, %v1713, 0.0
    %1715 = vadd.xlane.f32.xlu0 %v1714
    %v1716 = vpop.xlane.xlu0 %1715
    %v1717 = vrcp.pop %v1716
    %v1718 = vmul.f32 %v1713, %v1717
    %1719 = vrot.lane.b32.xlu0 %v1113, 40
    %v1720 = vpop.permute.xlu0 %1719
    %v1723 = vsel %vm1125, %v1718, 0
    %1725 = vmatprep.subr.mxu0 0.0
    %1726 = vmatpush1.msra.mxu0 %v1720
    %1727 = vmatprep.subr.mxu0 0.0
    %1728 = vmatpush1.msra.mxu0 0.0
    %1729 = vmatprep.subr.mxu0 0.0
    %1730 = vmatpush1.msra.mxu0 0.0
    %1731 = vmatprep.subr.mxu0 0.0
    %1732 = vmatpush1.msra.mxu0 0.0
    %1733 = vmatprep.subr.mxu0 0.0
    %1734 = vmatpush1.msra.mxu0 0.0
    %1735 = vmatprep.subr.mxu0 0.0
    %1736 = vmatpush1.msra.mxu0 0.0
    %1737 = vmatprep.subr.mxu0 0.0
    %1738 = vmatpush1.msra.mxu0 0.0
    %1739 = vmatprep.subr.mxu0 0.0
    %1740 = vmatpush1.msra.mxu0 0.0
    %1741 = vmatprep.subr.mxu0 0.0
    %1742 = vmatpush1.msra.mxu0 0.0
    %1743 = vmatprep.subr.mxu0 0.0
    %1744 = vmatpush1.msra.mxu0 0.0
    %1745 = vmatprep.subr.mxu0 0.0
    %1746 = vmatpush1.msra.mxu0 0.0
    %1747 = vmatprep.subr.mxu0 0.0
    %1748 = vmatpush1.msra.mxu0 0.0
    %1749 = vmatprep.subr.mxu0 0.0
    %1750 = vmatpush1.msra.mxu0 0.0
    %1751 = vmatprep.subr.mxu0 0.0
    %1752 = vmatpush1.msra.mxu0 0.0
    %1753 = vmatprep.subr.mxu0 0.0
    %1754 = vmatpush1.msra.mxu0 0.0
    %1755 = vmatprep.subr.mxu0 0.0
    %1756 = vmatpush1.msra.mxu0 0.0
    %1757 = vmatprep.subr.mxu0 0.0
    %1758 = vmatpush1.msra.mxu0 0.0
    %1759 = vmatprep.subr.mxu0 0.0
    %1760 = vmatpush1.msra.mxu0 0.0
    %1761 = vmatprep.subr.mxu0 0.0
    %1762 = vmatpush1.msra.mxu0 0.0
    %1763 = vmatprep.subr.mxu0 0.0
    %1764 = vmatpush1.msra.mxu0 0.0
    %1765 = vmatprep.subr.mxu0 0.0
    %1766 = vmatpush1.msra.mxu0 0.0
    %1767 = vmatprep.subr.mxu0 0.0
    %1768 = vmatpush1.msra.mxu0 0.0
    %1769 = vmatprep.subr.mxu0 0.0
    %1770 = vmatpush1.msra.mxu0 0.0
    %1771 = vmatprep.subr.mxu0 0.0
    %1772 = vmatpush1.msra.mxu0 0.0
    %1773 = vmatprep.subr.mxu0 0.0
    %1774 = vmatpush1.msra.mxu0 0.0
    %1775 = vmatprep.subr.mxu0 0.0
    %1776 = vmatpush1.msra.mxu0 0.0
    %1777 = vmatprep.subr.mxu0 0.0
    %1778 = vmatpush1.msra.mxu0 0.0
    %1779 = vmatprep.subr.mxu0 0.0
    %1780 = vmatpush1.msra.mxu0 0.0
    %1781 = vmatprep.subr.mxu0 0.0
    %1782 = vmatpush1.msra.mxu0 0.0
    %1783 = vmatprep.subr.mxu0 0.0
    %1784 = vmatpush1.msra.mxu0 0.0
    %1785 = vmatprep.subr.mxu0 0.0
    %1786 = vmatpush1.msra.mxu0 0.0
    %1787 = vmatprep.subr.mxu0 0.0
    %1788 = vmatpush1.msra.mxu0 0.0
    %1789 = vmatprep.mubr.f32.mxu0 0.0
    %1790 = vmatmul.mubr.f32.gmra.mrb[0].mxu0 %v1723
    %v1791 = vpop.f32.mrb[0].mxu0
    %v1792 = vadd.f32 0.0, %v1791
    %v1793 = vpop.f32.mrb[0].mxu0
    %1794 = vdwg.mxu0
    %1796 = vrot.lane.b32.xlu0 %v1792, 24
    %v1797 = vpop.permute.xlu0 %1796
    %vm1799 = vcmask 261312
    %1800 = vst.msk [vmem:[#allocation2] sm:$0xff] %vm1799, %v1797
    %s1801 = scalar_lea.vmem %s1, 8
    %v1802 = vld [vmem:[%s1801] sm:$0xff]
    %1804 = vrot.lane.b32.xlu0 %v1118, 96
    %v1805 = vpop.permute.xlu0 %1804
    %v1806 = vsel %vm1125, %v1118, 0
    %v1808 = vsel %vm1125, %v1805, 0
    %1810 = vmatprep.subr.mxu0 0.0
    %1811 = vmatpush1.xpose.msra.mxu0 %v1808
    %1812 = vmatprep.subr.mxu0 0.0
    %1813 = vmatpush1.xpose.msra.mxu0 0.0
    %1814 = vmatprep.subr.mxu0 0.0
    %1815 = vmatpush1.xpose.msra.mxu0 0.0
    %1816 = vmatprep.subr.mxu0 0.0
    %1817 = vmatpush1.xpose.msra.mxu0 0.0
    %1818 = vmatprep.subr.mxu0 0.0
    %1819 = vmatpush1.xpose.msra.mxu0 0.0
    %1820 = vmatprep.subr.mxu0 0.0
    %1821 = vmatpush1.xpose.msra.mxu0 0.0
    %1822 = vmatprep.subr.mxu0 0.0
    %1823 = vmatpush1.xpose.msra.mxu0 0.0
    %1824 = vmatprep.subr.mxu0 0.0
    %1825 = vmatpush1.xpose.msra.mxu0 0.0
    %1826 = vmatprep.subr.mxu0 0.0
    %1827 = vmatpush1.xpose.msra.mxu0 0.0
    %1828 = vmatprep.subr.mxu0 0.0
    %1829 = vmatpush1.xpose.msra.mxu0 0.0
    %1830 = vmatprep.subr.mxu0 0.0
    %1831 = vmatpush1.xpose.msra.mxu0 0.0
    %1832 = vmatprep.subr.mxu0 0.0
    %1833 = vmatpush1.xpose.msra.mxu0 0.0
    %1834 = vmatprep.subr.mxu0 0.0
    %1835 = vmatpush1.xpose.msra.mxu0 0.0
    %1836 = vmatprep.subr.mxu0 0.0
    %1837 = vmatpush1.xpose.msra.mxu0 0.0
    %1838 = vmatprep.subr.mxu0 0.0
    %1839 = vmatpush1.xpose.msra.mxu0 0.0
    %1840 = vmatprep.subr.mxu0 0.0
    %1841 = vmatpush1.xpose.msra.mxu0 0.0
    %1842 = vmatprep.subr.mxu0 0.0
    %1843 = vmatpush1.xpose.msra.mxu0 0.0
    %1844 = vmatprep.subr.mxu0 0.0
    %1845 = vmatpush1.xpose.msra.mxu0 0.0
    %1846 = vmatprep.subr.mxu0 0.0
    %1847 = vmatpush1.xpose.msra.mxu0 0.0
    %1848 = vmatprep.subr.mxu0 0.0
    %1849 = vmatpush1.xpose.msra.mxu0 0.0
    %1850 = vmatprep.subr.mxu0 0.0
    %1851 = vmatpush1.xpose.msra.mxu0 0.0
    %1852 = vmatprep.subr.mxu0 0.0
    %1853 = vmatpush1.xpose.msra.mxu0 0.0
    %1854 = vmatprep.subr.mxu0 0.0
    %1855 = vmatpush1.xpose.msra.mxu0 0.0
    %1856 = vmatprep.subr.mxu0 0.0
    %1857 = vmatpush1.xpose.msra.mxu0 0.0
    %1858 = vmatprep.subr.mxu0 0.0
    %1859 = vmatpush1.xpose.msra.mxu0 0.0
    %1860 = vmatprep.subr.mxu0 0.0
    %1861 = vmatpush1.xpose.msra.mxu0 0.0
    %1862 = vmatprep.subr.mxu0 0.0
    %1863 = vmatpush1.xpose.msra.mxu0 0.0
    %1864 = vmatprep.subr.mxu0 0.0
    %1865 = vmatpush1.xpose.msra.mxu0 0.0
    %1866 = vmatprep.subr.mxu0 0.0
    %1867 = vmatpush1.xpose.msra.mxu0 0.0
    %1868 = vmatprep.subr.mxu0 0.0
    %1869 = vmatpush1.xpose.msra.mxu0 0.0
    %1870 = vmatprep.subr.mxu0 0.0
    %1871 = vmatpush1.xpose.msra.mxu0 0.0
    %1872 = vmatprep.subr.mxu0 0.0
    %1873 = vmatpush1.xpose.msra.mxu0 0.0
    %1874 = vmatprep.mubr.f32.mxu0 0.0
    %1875 = vmatmul.mubr.f32.gmra.mrb[0].mxu0 %v1806
    %v1876 = vpop.f32.mrb[0].mxu0
    %v1877 = vadd.f32 %v1802, %v1876
    %v1878 = vpop.f32.mrb[0].mxu0
    %1879 = vdwg.mxu0
    %v1880 = vsel %vm1125, %v1877, -inf
    %1881 = vmax.xlane.f32.xlu0 %v1880
    %v1882 = vpop.xlane.xlu0 %1881
    %v1883 = vsub.f32 %v1877, %v1882
    %v1884 = vmul.f32 %v1883, 1.442695
    %v1885 = vpow.pop %v1884
    %v1886 = vsel %vm1125, %v1885, 0.0
    %1887 = vadd.xlane.f32.xlu0 %v1886
    %v1888 = vpop.xlane.xlu0 %1887
    %v1889 = vrcp.pop %v1888
    %v1890 = vmul.f32 %v1885, %v1889
    %1891 = vrot.lane.b32.xlu0 %v1118, 64
    %v1892 = vpop.permute.xlu0 %1891
    %v1895 = vsel %vm1125, %v1890, 0
    %1897 = vmatprep.subr.mxu0 0.0
    %1898 = vmatpush1.msra.mxu0 %v1892
    %1899 = vmatprep.subr.mxu0 0.0
    %1900 = vmatpush1.msra.mxu0 0.0
    %1901 = vmatprep.subr.mxu0 0.0
    %1902 = vmatpush1.msra.mxu0 0.0
    %1903 = vmatprep.subr.mxu0 0.0
    %1904 = vmatpush1.msra.mxu0 0.0
    %1905 = vmatprep.subr.mxu0 0.0
    %1906 = vmatpush1.msra.mxu0 0.0
    %1907 = vmatprep.subr.mxu0 0.0
    %1908 = vmatpush1.msra.mxu0 0.0
    %1909 = vmatprep.subr.mxu0 0.0
    %1910 = vmatpush1.msra.mxu0 0.0
    %1911 = vmatprep.subr.mxu0 0.0
    %1912 = vmatpush1.msra.mxu0 0.0
    %1913 = vmatprep.subr.mxu0 0.0
    %1914 = vmatpush1.msra.mxu0 0.0
    %1915 = vmatprep.subr.mxu0 0.0
    %1916 = vmatpush1.msra.mxu0 0.0
    %1917 = vmatprep.subr.mxu0 0.0
    %1918 = vmatpush1.msra.mxu0 0.0
    %1919 = vmatprep.subr.mxu0 0.0
    %1920 = vmatpush1.msra.mxu0 0.0
    %1921 = vmatprep.subr.mxu0 0.0
    %1922 = vmatpush1.msra.mxu0 0.0
    %1923 = vmatprep.subr.mxu0 0.0
    %1924 = vmatpush1.msra.mxu0 0.0
    %1925 = vmatprep.subr.mxu0 0.0
    %1926 = vmatpush1.msra.mxu0 0.0
    %1927 = vmatprep.subr.mxu0 0.0
    %1928 = vmatpush1.msra.mxu0 0.0
    %1929 = vmatprep.subr.mxu0 0.0
    %1930 = vmatpush1.msra.mxu0 0.0
    %1931 = vmatprep.subr.mxu0 0.0
    %1932 = vmatpush1.msra.mxu0 0.0
    %1933 = vmatprep.subr.mxu0 0.0
    %1934 = vmatpush1.msra.mxu0 0.0
    %1935 = vmatprep.subr.mxu0 0.0
    %1936 = vmatpush1.msra.mxu0 0.0
    %1937 = vmatprep.subr.mxu0 0.0
    %1938 = vmatpush1.msra.mxu0 0.0
    %1939 = vmatprep.subr.mxu0 0.0
    %1940 = vmatpush1.msra.mxu0 0.0
    %1941 = vmatprep.subr.mxu0 0.0
    %1942 = vmatpush1.msra.mxu0 0.0
    %1943 = vmatprep.subr.mxu0 0.0
    %1944 = vmatpush1.msra.mxu0 0.0
    %1945 = vmatprep.subr.mxu0 0.0
    %1946 = vmatpush1.msra.mxu0 0.0
    %1947 = vmatprep.subr.mxu0 0.0
    %1948 = vmatpush1.msra.mxu0 0.0
    %1949 = vmatprep.subr.mxu0 0.0
    %1950 = vmatpush1.msra.mxu0 0.0
    %1951 = vmatprep.subr.mxu0 0.0
    %1952 = vmatpush1.msra.mxu0 0.0
    %1953 = vmatprep.subr.mxu0 0.0
    %1954 = vmatpush1.msra.mxu0 0.0
    %1955 = vmatprep.subr.mxu0 0.0
    %1956 = vmatpush1.msra.mxu0 0.0
    %1957 = vmatprep.subr.mxu0 0.0
    %1958 = vmatpush1.msra.mxu0 0.0
    %1959 = vmatprep.subr.mxu0 0.0
    %1960 = vmatpush1.msra.mxu0 0.0
    %1961 = vmatprep.mubr.f32.mxu0 0.0
    %1962 = vmatmul.mubr.f32.gmra.mrb[0].mxu0 %v1895
    %v1963 = vpop.f32.mrb[0].mxu0
    %v1964 = vadd.f32 0.0, %v1963
    %v1965 = vpop.f32.mrb[0].mxu0
    %1966 = vdwg.mxu0
    %1967 = vst.msk [vmem:[#allocation2 + $0x8] sm:$0xff] %vm1125, %v1964
    %1968 = vrot.lane.b32.xlu0 %v1118, 120
    %v1969 = vpop.permute.xlu0 %1968
    %1970 = vrot.lane.b32.xlu0 %v1118, 88
    %v1971 = vpop.permute.xlu0 %1970
    %v1972 = vsel %vm1125, %v1969, 0
    %v1974 = vsel %vm1125, %v1971, 0
    %1976 = vmatprep.subr.mxu0 0.0
    %1977 = vmatpush1.xpose.msra.mxu0 %v1974
    %1978 = vmatprep.subr.mxu0 0.0
    %1979 = vmatpush1.xpose.msra.mxu0 0.0
    %1980 = vmatprep.subr.mxu0 0.0
    %1981 = vmatpush1.xpose.msra.mxu0 0.0
    %1982 = vmatprep.subr.mxu0 0.0
    %1983 = vmatpush1.xpose.msra.mxu0 0.0
    %1984 = vmatprep.subr.mxu0 0.0
    %1985 = vmatpush1.xpose.msra.mxu0 0.0
    %1986 = vmatprep.subr.mxu0 0.0
    %1987 = vmatpush1.xpose.msra.mxu0 0.0
    %1988 = vmatprep.subr.mxu0 0.0
    %1989 = vmatpush1.xpose.msra.mxu0 0.0
    %1990 = vmatprep.subr.mxu0 0.0
    %1991 = vmatpush1.xpose.msra.mxu0 0.0
    %1992 = vmatprep.subr.mxu0 0.0
    %1993 = vmatpush1.xpose.msra.mxu0 0.0
    %1994 = vmatprep.subr.mxu0 0.0
    %1995 = vmatpush1.xpose.msra.mxu0 0.0
    %1996 = vmatprep.subr.mxu0 0.0
    %1997 = vmatpush1.xpose.msra.mxu0 0.0
    %1998 = vmatprep.subr.mxu0 0.0
    %1999 = vmatpush1.xpose.msra.mxu0 0.0
    %2000 = vmatprep.subr.mxu0 0.0
    %2001 = vmatpush1.xpose.msra.mxu0 0.0
    %2002 = vmatprep.subr.mxu0 0.0
    %2003 = vmatpush1.xpose.msra.mxu0 0.0
    %2004 = vmatprep.subr.mxu0 0.0
    %2005 = vmatpush1.xpose.msra.mxu0 0.0
    %2006 = vmatprep.subr.mxu0 0.0
    %2007 = vmatpush1.xpose.msra.mxu0 0.0
    %2008 = vmatprep.subr.mxu0 0.0
    %2009 = vmatpush1.xpose.msra.mxu0 0.0
    %2010 = vmatprep.subr.mxu0 0.0
    %2011 = vmatpush1.xpose.msra.mxu0 0.0
    %2012 = vmatprep.subr.mxu0 0.0
    %2013 = vmatpush1.xpose.msra.mxu0 0.0
    %2014 = vmatprep.subr.mxu0 0.0
    %2015 = vmatpush1.xpose.msra.mxu0 0.0
    %2016 = vmatprep.subr.mxu0 0.0
    %2017 = vmatpush1.xpose.msra.mxu0 0.0
    %2018 = vmatprep.subr.mxu0 0.0
    %2019 = vmatpush1.xpose.msra.mxu0 0.0
    %2020 = vmatprep.subr.mxu0 0.0
    %2021 = vmatpush1.xpose.msra.mxu0 0.0
    %2022 = vmatprep.subr.mxu0 0.0
    %2023 = vmatpush1.xpose.msra.mxu0 0.0
    %2024 = vmatprep.subr.mxu0 0.0
    %2025 = vmatpush1.xpose.msra.mxu0 0.0
    %2026 = vmatprep.subr.mxu0 0.0
    %2027 = vmatpush1.xpose.msra.mxu0 0.0
    %2028 = vmatprep.subr.mxu0 0.0
    %2029 = vmatpush1.xpose.msra.mxu0 0.0
    %2030 = vmatprep.subr.mxu0 0.0
    %2031 = vmatpush1.xpose.msra.mxu0 0.0
    %2032 = vmatprep.subr.mxu0 0.0
    %2033 = vmatpush1.xpose.msra.mxu0 0.0
    %2034 = vmatprep.subr.mxu0 0.0
    %2035 = vmatpush1.xpose.msra.mxu0 0.0
    %2036 = vmatprep.subr.mxu0 0.0
    %2037 = vmatpush1.xpose.msra.mxu0 0.0
    %2038 = vmatprep.subr.mxu0 0.0
    %2039 = vmatpush1.xpose.msra.mxu0 0.0
    %2040 = vmatprep.mubr.f32.mxu0 0.0
    %2041 = vmatmul.mubr.f32.gmra.mrb[0].mxu0 %v1972
    %v2042 = vpop.f32.mrb[0].mxu0
    %v2043 = vadd.f32 %v1802, %v2042
    %v2044 = vpop.f32.mrb[0].mxu0
    %2045 = vdwg.mxu0
    %v2046 = vsel %vm1125, %v2043, -inf
    %2047 = vmax.xlane.f32.xlu0 %v2046
    %v2048 = vpop.xlane.xlu0 %2047
    %v2049 = vsub.f32 %v2043, %v2048
    %v2050 = vmul.f32 %v2049, 1.442695
    %v2051 = vpow.pop %v2050
    %v2052 = vsel %vm1125, %v2051, 0.0
    %2053 = vadd.xlane.f32.xlu0 %v2052
    %v2054 = vpop.xlane.xlu0 %2053
    %v2055 = vrcp.pop %v2054
    %v2056 = vmul.f32 %v2051, %v2055
    %2057 = vrot.lane.b32.xlu0 %v1118, 56
    %v2058 = vpop.permute.xlu0 %2057
    %v2061 = vsel %vm1125, %v2056, 0
    %2063 = vmatprep.subr.mxu0 0.0
    %2064 = vmatpush1.msra.mxu0 %v2058
    %2065 = vmatprep.subr.mxu0 0.0
    %2066 = vmatpush1.msra.mxu0 0.0
    %2067 = vmatprep.subr.mxu0 0.0
    %2068 = vmatpush1.msra.mxu0 0.0
    %2069 = vmatprep.subr.mxu0 0.0
    %2070 = vmatpush1.msra.mxu0 0.0
    %2071 = vmatprep.subr.mxu0 0.0
    %2072 = vmatpush1.msra.mxu0 0.0
    %2073 = vmatprep.subr.mxu0 0.0
    %2074 = vmatpush1.msra.mxu0 0.0
    %2075 = vmatprep.subr.mxu0 0.0
    %2076 = vmatpush1.msra.mxu0 0.0
    %2077 = vmatprep.subr.mxu0 0.0
    %2078 = vmatpush1.msra.mxu0 0.0
    %2079 = vmatprep.subr.mxu0 0.0
    %2080 = vmatpush1.msra.mxu0 0.0
    %2081 = vmatprep.subr.mxu0 0.0
    %2082 = vmatpush1.msra.mxu0 0.0
    %2083 = vmatprep.subr.mxu0 0.0
    %2084 = vmatpush1.msra.mxu0 0.0
    %2085 = vmatprep.subr.mxu0 0.0
    %2086 = vmatpush1.msra.mxu0 0.0
    %2087 = vmatprep.subr.mxu0 0.0
    %2088 = vmatpush1.msra.mxu0 0.0
    %2089 = vmatprep.subr.mxu0 0.0
    %2090 = vmatpush1.msra.mxu0 0.0
    %2091 = vmatprep.subr.mxu0 0.0
    %2092 = vmatpush1.msra.mxu0 0.0
    %2093 = vmatprep.subr.mxu0 0.0
    %2094 = vmatpush1.msra.mxu0 0.0
    %2095 = vmatprep.subr.mxu0 0.0
    %2096 = vmatpush1.msra.mxu0 0.0
    %2097 = vmatprep.subr.mxu0 0.0
    %2098 = vmatpush1.msra.mxu0 0.0
    %2099 = vmatprep.subr.mxu0 0.0
    %2100 = vmatpush1.msra.mxu0 0.0
    %2101 = vmatprep.subr.mxu0 0.0
    %2102 = vmatpush1.msra.mxu0 0.0
    %2103 = vmatprep.subr.mxu0 0.0
    %2104 = vmatpush1.msra.mxu0 0.0
    %2105 = vmatprep.subr.mxu0 0.0
    %2106 = vmatpush1.msra.mxu0 0.0
    %2107 = vmatprep.subr.mxu0 0.0
    %2108 = vmatpush1.msra.mxu0 0.0
    %2109 = vmatprep.subr.mxu0 0.0
    %2110 = vmatpush1.msra.mxu0 0.0
    %2111 = vmatprep.subr.mxu0 0.0
    %2112 = vmatpush1.msra.mxu0 0.0
    %2113 = vmatprep.subr.mxu0 0.0
    %2114 = vmatpush1.msra.mxu0 0.0
    %2115 = vmatprep.subr.mxu0 0.0
    %2116 = vmatpush1.msra.mxu0 0.0
    %2117 = vmatprep.subr.mxu0 0.0
    %2118 = vmatpush1.msra.mxu0 0.0
    %2119 = vmatprep.subr.mxu0 0.0
    %2120 = vmatpush1.msra.mxu0 0.0
    %2121 = vmatprep.subr.mxu0 0.0
    %2122 = vmatpush1.msra.mxu0 0.0
    %2123 = vmatprep.subr.mxu0 0.0
    %2124 = vmatpush1.msra.mxu0 0.0
    %2125 = vmatprep.subr.mxu0 0.0
    %2126 = vmatpush1.msra.mxu0 0.0
    %2127 = vmatprep.mubr.f32.mxu0 0.0
    %2128 = vmatmul.mubr.f32.gmra.mrb[0].mxu0 %v2061
    %v2129 = vpop.f32.mrb[0].mxu0
    %v2130 = vadd.f32 0.0, %v2129
    %v2131 = vpop.f32.mrb[0].mxu0
    %2132 = vdwg.mxu0
    %2134 = vrot.lane.b32.xlu0 %v2130, 8
    %v2135 = vpop.permute.xlu0 %2134
    %2137 = vst.msk [vmem:[#allocation2 + $0x8] sm:$0xff] %vm1457, %v2135
    %2138 = vrot.lane.b32.xlu0 %v1118, 112
    %v2139 = vpop.permute.xlu0 %2138
    %2140 = vrot.lane.b32.xlu0 %v1118, 80
    %v2141 = vpop.permute.xlu0 %2140
    %v2142 = vsel %vm1125, %v2139, 0
    %v2144 = vsel %vm1125, %v2141, 0
    %2146 = vmatprep.subr.mxu0 0.0
    %2147 = vmatpush1.xpose.msra.mxu0 %v2144
    %2148 = vmatprep.subr.mxu0 0.0
    %2149 = vmatpush1.xpose.msra.mxu0 0.0
    %2150 = vmatprep.subr.mxu0 0.0
    %2151 = vmatpush1.xpose.msra.mxu0 0.0
    %2152 = vmatprep.subr.mxu0 0.0
    %2153 = vmatpush1.xpose.msra.mxu0 0.0
    %2154 = vmatprep.subr.mxu0 0.0
    %2155 = vmatpush1.xpose.msra.mxu0 0.0
    %2156 = vmatprep.subr.mxu0 0.0
    %2157 = vmatpush1.xpose.msra.mxu0 0.0
    %2158 = vmatprep.subr.mxu0 0.0
    %2159 = vmatpush1.xpose.msra.mxu0 0.0
    %2160 = vmatprep.subr.mxu0 0.0
    %2161 = vmatpush1.xpose.msra.mxu0 0.0
    %2162 = vmatprep.subr.mxu0 0.0
    %2163 = vmatpush1.xpose.msra.mxu0 0.0
    %2164 = vmatprep.subr.mxu0 0.0
    %2165 = vmatpush1.xpose.msra.mxu0 0.0
    %2166 = vmatprep.subr.mxu0 0.0
    %2167 = vmatpush1.xpose.msra.mxu0 0.0
    %2168 = vmatprep.subr.mxu0 0.0
    %2169 = vmatpush1.xpose.msra.mxu0 0.0
    %2170 = vmatprep.subr.mxu0 0.0
    %2171 = vmatpush1.xpose.msra.mxu0 0.0
    %2172 = vmatprep.subr.mxu0 0.0
    %2173 = vmatpush1.xpose.msra.mxu0 0.0
    %2174 = vmatprep.subr.mxu0 0.0
    %2175 = vmatpush1.xpose.msra.mxu0 0.0
    %2176 = vmatprep.subr.mxu0 0.0
    %2177 = vmatpush1.xpose.msra.mxu0 0.0
    %2178 = vmatprep.subr.mxu0 0.0
    %2179 = vmatpush1.xpose.msra.mxu0 0.0
    %2180 = vmatprep.subr.mxu0 0.0
    %2181 = vmatpush1.xpose.msra.mxu0 0.0
    %2182 = vmatprep.subr.mxu0 0.0
    %2183 = vmatpush1.xpose.msra.mxu0 0.0
    %2184 = vmatprep.subr.mxu0 0.0
    %2185 = vmatpush1.xpose.msra.mxu0 0.0
    %2186 = vmatprep.subr.mxu0 0.0
    %2187 = vmatpush1.xpose.msra.mxu0 0.0
    %2188 = vmatprep.subr.mxu0 0.0
    %2189 = vmatpush1.xpose.msra.mxu0 0.0
    %2190 = vmatprep.subr.mxu0 0.0
    %2191 = vmatpush1.xpose.msra.mxu0 0.0
    %2192 = vmatprep.subr.mxu0 0.0
    %2193 = vmatpush1.xpose.msra.mxu0 0.0
    %2194 = vmatprep.subr.mxu0 0.0
    %2195 = vmatpush1.xpose.msra.mxu0 0.0
    %2196 = vmatprep.subr.mxu0 0.0
    %2197 = vmatpush1.xpose.msra.mxu0 0.0
    %2198 = vmatprep.subr.mxu0 0.0
    %2199 = vmatpush1.xpose.msra.mxu0 0.0
    %2200 = vmatprep.subr.mxu0 0.0
    %2201 = vmatpush1.xpose.msra.mxu0 0.0
    %2202 = vmatprep.subr.mxu0 0.0
    %2203 = vmatpush1.xpose.msra.mxu0 0.0
    %2204 = vmatprep.subr.mxu0 0.0
    %2205 = vmatpush1.xpose.msra.mxu0 0.0
    %2206 = vmatprep.subr.mxu0 0.0
    %2207 = vmatpush1.xpose.msra.mxu0 0.0
    %2208 = vmatprep.subr.mxu0 0.0
    %2209 = vmatpush1.xpose.msra.mxu0 0.0
    %2210 = vmatprep.mubr.f32.mxu0 0.0
    %2211 = vmatmul.mubr.f32.gmra.mrb[0].mxu0 %v2142
    %v2212 = vpop.f32.mrb[0].mxu0
    %v2213 = vadd.f32 %v1802, %v2212
    %v2214 = vpop.f32.mrb[0].mxu0
    %2215 = vdwg.mxu0
    %v2216 = vsel %vm1125, %v2213, -inf
    %2217 = vmax.xlane.f32.xlu0 %v2216
    %v2218 = vpop.xlane.xlu0 %2217
    %v2219 = vsub.f32 %v2213, %v2218
    %v2220 = vmul.f32 %v2219, 1.442695
    %v2221 = vpow.pop %v2220
    %v2222 = vsel %vm1125, %v2221, 0.0
    %2223 = vadd.xlane.f32.xlu0 %v2222
    %v2224 = vpop.xlane.xlu0 %2223
    %v2225 = vrcp.pop %v2224
    %v2226 = vmul.f32 %v2221, %v2225
    %2227 = vrot.lane.b32.xlu0 %v1118, 48
    %v2228 = vpop.permute.xlu0 %2227
    %v2231 = vsel %vm1125, %v2226, 0
    %2233 = vmatprep.subr.mxu0 0.0
    %2234 = vmatpush1.msra.mxu0 %v2228
    %2235 = vmatprep.subr.mxu0 0.0
    %2236 = vmatpush1.msra.mxu0 0.0
    %2237 = vmatprep.subr.mxu0 0.0
    %2238 = vmatpush1.msra.mxu0 0.0
    %2239 = vmatprep.subr.mxu0 0.0
    %2240 = vmatpush1.msra.mxu0 0.0
    %2241 = vmatprep.subr.mxu0 0.0
    %2242 = vmatpush1.msra.mxu0 0.0
    %2243 = vmatprep.subr.mxu0 0.0
    %2244 = vmatpush1.msra.mxu0 0.0
    %2245 = vmatprep.subr.mxu0 0.0
    %2246 = vmatpush1.msra.mxu0 0.0
    %2247 = vmatprep.subr.mxu0 0.0
    %2248 = vmatpush1.msra.mxu0 0.0
    %2249 = vmatprep.subr.mxu0 0.0
    %2250 = vmatpush1.msra.mxu0 0.0
    %2251 = vmatprep.subr.mxu0 0.0
    %2252 = vmatpush1.msra.mxu0 0.0
    %2253 = vmatprep.subr.mxu0 0.0
    %2254 = vmatpush1.msra.mxu0 0.0
    %2255 = vmatprep.subr.mxu0 0.0
    %2256 = vmatpush1.msra.mxu0 0.0
    %2257 = vmatprep.subr.mxu0 0.0
    %2258 = vmatpush1.msra.mxu0 0.0
    %2259 = vmatprep.subr.mxu0 0.0
    %2260 = vmatpush1.msra.mxu0 0.0
    %2261 = vmatprep.subr.mxu0 0.0
    %2262 = vmatpush1.msra.mxu0 0.0
    %2263 = vmatprep.subr.mxu0 0.0
    %2264 = vmatpush1.msra.mxu0 0.0
    %2265 = vmatprep.subr.mxu0 0.0
    %2266 = vmatpush1.msra.mxu0 0.0
    %2267 = vmatprep.subr.mxu0 0.0
    %2268 = vmatpush1.msra.mxu0 0.0
    %2269 = vmatprep.subr.mxu0 0.0
    %2270 = vmatpush1.msra.mxu0 0.0
    %2271 = vmatprep.subr.mxu0 0.0
    %2272 = vmatpush1.msra.mxu0 0.0
    %2273 = vmatprep.subr.mxu0 0.0
    %2274 = vmatpush1.msra.mxu0 0.0
    %2275 = vmatprep.subr.mxu0 0.0
    %2276 = vmatpush1.msra.mxu0 0.0
    %2277 = vmatprep.subr.mxu0 0.0
    %2278 = vmatpush1.msra.mxu0 0.0
    %2279 = vmatprep.subr.mxu0 0.0
    %2280 = vmatpush1.msra.mxu0 0.0
    %2281 = vmatprep.subr.mxu0 0.0
    %2282 = vmatpush1.msra.mxu0 0.0
    %2283 = vmatprep.subr.mxu0 0.0
    %2284 = vmatpush1.msra.mxu0 0.0
    %2285 = vmatprep.subr.mxu0 0.0
    %2286 = vmatpush1.msra.mxu0 0.0
    %2287 = vmatprep.subr.mxu0 0.0
    %2288 = vmatpush1.msra.mxu0 0.0
    %2289 = vmatprep.subr.mxu0 0.0
    %2290 = vmatpush1.msra.mxu0 0.0
    %2291 = vmatprep.subr.mxu0 0.0
    %2292 = vmatpush1.msra.mxu0 0.0
    %2293 = vmatprep.subr.mxu0 0.0
    %2294 = vmatpush1.msra.mxu0 0.0
    %2295 = vmatprep.subr.mxu0 0.0
    %2296 = vmatpush1.msra.mxu0 0.0
    %2297 = vmatprep.mubr.f32.mxu0 0.0
    %2298 = vmatmul.mubr.f32.gmra.mrb[0].mxu0 %v2231
    %v2299 = vpop.f32.mrb[0].mxu0
    %v2300 = vadd.f32 0.0, %v2299
    %v2301 = vpop.f32.mrb[0].mxu0
    %2302 = vdwg.mxu0
    %2304 = vrot.lane.b32.xlu0 %v2300, 16
    %v2305 = vpop.permute.xlu0 %2304
    %2307 = vst.msk [vmem:[#allocation2 + $0x8] sm:$0xff] %vm1628, %v2305
    %2308 = vrot.lane.b32.xlu0 %v1118, 104
    %v2309 = vpop.permute.xlu0 %2308
    %2310 = vrot.lane.b32.xlu0 %v1118, 72
    %v2311 = vpop.permute.xlu0 %2310
    %v2312 = vsel %vm1125, %v2309, 0
    %v2314 = vsel %vm1125, %v2311, 0
    %2316 = vmatprep.subr.mxu0 0.0
    %2317 = vmatpush1.xpose.msra.mxu0 %v2314
    %2318 = vmatprep.subr.mxu0 0.0
    %2319 = vmatpush1.xpose.msra.mxu0 0.0
    %2320 = vmatprep.subr.mxu0 0.0
    %2321 = vmatpush1.xpose.msra.mxu0 0.0
    %2322 = vmatprep.subr.mxu0 0.0
    %2323 = vmatpush1.xpose.msra.mxu0 0.0
    %2324 = vmatprep.subr.mxu0 0.0
    %2325 = vmatpush1.xpose.msra.mxu0 0.0
    %2326 = vmatprep.subr.mxu0 0.0
    %2327 = vmatpush1.xpose.msra.mxu0 0.0
    %2328 = vmatprep.subr.mxu0 0.0
    %2329 = vmatpush1.xpose.msra.mxu0 0.0
    %2330 = vmatprep.subr.mxu0 0.0
    %2331 = vmatpush1.xpose.msra.mxu0 0.0
    %2332 = vmatprep.subr.mxu0 0.0
    %2333 = vmatpush1.xpose.msra.mxu0 0.0
    %2334 = vmatprep.subr.mxu0 0.0
    %2335 = vmatpush1.xpose.msra.mxu0 0.0
    %2336 = vmatprep.subr.mxu0 0.0
    %2337 = vmatpush1.xpose.msra.mxu0 0.0
    %2338 = vmatprep.subr.mxu0 0.0
    %2339 = vmatpush1.xpose.msra.mxu0 0.0
    %2340 = vmatprep.subr.mxu0 0.0
    %2341 = vmatpush1.xpose.msra.mxu0 0.0
    %2342 = vmatprep.subr.mxu0 0.0
    %2343 = vmatpush1.xpose.msra.mxu0 0.0
    %2344 = vmatprep.subr.mxu0 0.0
    %2345 = vmatpush1.xpose.msra.mxu0 0.0
    %2346 = vmatprep.subr.mxu0 0.0
    %2347 = vmatpush1.xpose.msra.mxu0 0.0
    %2348 = vmatprep.subr.mxu0 0.0
    %2349 = vmatpush1.xpose.msra.mxu0 0.0
    %2350 = vmatprep.subr.mxu0 0.0
    %2351 = vmatpush1.xpose.msra.mxu0 0.0
    %2352 = vmatprep.subr.mxu0 0.0
    %2353 = vmatpush1.xpose.msra.mxu0 0.0
    %2354 = vmatprep.subr.mxu0 0.0
    %2355 = vmatpush1.xpose.msra.mxu0 0.0
    %2356 = vmatprep.subr.mxu0 0.0
    %2357 = vmatpush1.xpose.msra.mxu0 0.0
    %2358 = vmatprep.subr.mxu0 0.0
    %2359 = vmatpush1.xpose.msra.mxu0 0.0
    %2360 = vmatprep.subr.mxu0 0.0
    %2361 = vmatpush1.xpose.msra.mxu0 0.0
    %2362 = vmatprep.subr.mxu0 0.0
    %2363 = vmatpush1.xpose.msra.mxu0 0.0
    %2364 = vmatprep.subr.mxu0 0.0
    %2365 = vmatpush1.xpose.msra.mxu0 0.0
    %2366 = vmatprep.subr.mxu0 0.0
    %2367 = vmatpush1.xpose.msra.mxu0 0.0
    %2368 = vmatprep.subr.mxu0 0.0
    %2369 = vmatpush1.xpose.msra.mxu0 0.0
    %2370 = vmatprep.subr.mxu0 0.0
    %2371 = vmatpush1.xpose.msra.mxu0 0.0
    %2372 = vmatprep.subr.mxu0 0.0
    %2373 = vmatpush1.xpose.msra.mxu0 0.0
    %2374 = vmatprep.subr.mxu0 0.0
    %2375 = vmatpush1.xpose.msra.mxu0 0.0
    %2376 = vmatprep.subr.mxu0 0.0
    %2377 = vmatpush1.xpose.msra.mxu0 0.0
    %2378 = vmatprep.subr.mxu0 0.0
    %2379 = vmatpush1.xpose.msra.mxu0 0.0
    %2380 = vmatprep.mubr.f32.mxu0 0.0
    %2381 = vmatmul.mubr.f32.gmra.mrb[0].mxu0 %v2312
    %v2382 = vpop.f32.mrb[0].mxu0
    %v2383 = vadd.f32 %v1802, %v2382
    %v2384 = vpop.f32.mrb[0].mxu0
    %2385 = vdwg.mxu0
    %v2386 = vsel %vm1125, %v2383, -inf
    %2387 = vmax.xlane.f32.xlu0 %v2386
    %v2388 = vpop.xlane.xlu0 %2387
    %v2389 = vsub.f32 %v2383, %v2388
    %v2390 = vmul.f32 %v2389, 1.442695
    %v2391 = vpow.pop %v2390
    %v2392 = vsel %vm1125, %v2391, 0.0
    %2393 = vadd.xlane.f32.xlu0 %v2392
    %v2394 = vpop.xlane.xlu0 %2393
    %v2395 = vrcp.pop %v2394
    %v2396 = vmul.f32 %v2391, %v2395
    %2397 = vrot.lane.b32.xlu0 %v1118, 40
    %v2398 = vpop.permute.xlu0 %2397
    %v2401 = vsel %vm1125, %v2396, 0
    %2403 = vmatprep.subr.mxu0 0.0
    %2404 = vmatpush1.msra.mxu0 %v2398
    %2405 = vmatprep.subr.mxu0 0.0
    %2406 = vmatpush1.msra.mxu0 0.0
    %2407 = vmatprep.subr.mxu0 0.0
    %2408 = vmatpush1.msra.mxu0 0.0
    %2409 = vmatprep.subr.mxu0 0.0
    %2410 = vmatpush1.msra.mxu0 0.0
    %2411 = vmatprep.subr.mxu0 0.0
    %2412 = vmatpush1.msra.mxu0 0.0
    %2413 = vmatprep.subr.mxu0 0.0
    %2414 = vmatpush1.msra.mxu0 0.0
    %2415 = vmatprep.subr.mxu0 0.0
    %2416 = vmatpush1.msra.mxu0 0.0
    %2417 = vmatprep.subr.mxu0 0.0
    %2418 = vmatpush1.msra.mxu0 0.0
    %2419 = vmatprep.subr.mxu0 0.0
    %2420 = vmatpush1.msra.mxu0 0.0
    %2421 = vmatprep.subr.mxu0 0.0
    %2422 = vmatpush1.msra.mxu0 0.0
    %2423 = vmatprep.subr.mxu0 0.0
    %2424 = vmatpush1.msra.mxu0 0.0
    %2425 = vmatprep.subr.mxu0 0.0
    %2426 = vmatpush1.msra.mxu0 0.0
    %2427 = vmatprep.subr.mxu0 0.0
    %2428 = vmatpush1.msra.mxu0 0.0
    %2429 = vmatprep.subr.mxu0 0.0
    %2430 = vmatpush1.msra.mxu0 0.0
    %2431 = vmatprep.subr.mxu0 0.0
    %2432 = vmatpush1.msra.mxu0 0.0
    %2433 = vmatprep.subr.mxu0 0.0
    %2434 = vmatpush1.msra.mxu0 0.0
    %2435 = vmatprep.subr.mxu0 0.0
    %2436 = vmatpush1.msra.mxu0 0.0
    %2437 = vmatprep.subr.mxu0 0.0
    %2438 = vmatpush1.msra.mxu0 0.0
    %2439 = vmatprep.subr.mxu0 0.0
    %2440 = vmatpush1.msra.mxu0 0.0
    %2441 = vmatprep.subr.mxu0 0.0
    %2442 = vmatpush1.msra.mxu0 0.0
    %2443 = vmatprep.subr.mxu0 0.0
    %2444 = vmatpush1.msra.mxu0 0.0
    %2445 = vmatprep.subr.mxu0 0.0
    %2446 = vmatpush1.msra.mxu0 0.0
    %2447 = vmatprep.subr.mxu0 0.0
    %2448 = vmatpush1.msra.mxu0 0.0
    %2449 = vmatprep.subr.mxu0 0.0
    %2450 = vmatpush1.msra.mxu0 0.0
    %2451 = vmatprep.subr.mxu0 0.0
    %2452 = vmatpush1.msra.mxu0 0.0
    %2453 = vmatprep.subr.mxu0 0.0
    %2454 = vmatpush1.msra.mxu0 0.0
    %2455 = vmatprep.subr.mxu0 0.0
    %2456 = vmatpush1.msra.mxu0 0.0
    %2457 = vmatprep.subr.mxu0 0.0
    %2458 = vmatpush1.msra.mxu0 0.0
    %2459 = vmatprep.subr.mxu0 0.0
    %2460 = vmatpush1.msra.mxu0 0.0
    %2461 = vmatprep.subr.mxu0 0.0
    %2462 = vmatpush1.msra.mxu0 0.0
    %2463 = vmatprep.subr.mxu0 0.0
    %2464 = vmatpush1.msra.mxu0 0.0
    %2465 = vmatprep.subr.mxu0 0.0
    %2466 = vmatpush1.msra.mxu0 0.0
    %2467 = vmatprep.mubr.f32.mxu0 0.0
    %2468 = vmatmul.mubr.f32.gmra.mrb[0].mxu0 %v2401
    %v2469 = vpop.f32.mrb[0].mxu0
    %v2470 = vadd.f32 0.0, %v2469
    %v2471 = vpop.f32.mrb[0].mxu0
    %2472 = vdwg.mxu0
    %2474 = vrot.lane.b32.xlu0 %v2470, 24
    %v2475 = vpop.permute.xlu0 %2474
    %2477 = vst.msk [vmem:[#allocation2 + $0x8] sm:$0xff] %vm1799, %v2475
    %v2478 = vld [vmem:[#allocation2] sm:$0xff]
    %v2479 = vld [vmem:[#allocation2 + $0x8] sm:$0xff]
    %v2480 = vlaneseq
    %v2481 = vshrl.u32 %v2480, 7
    %v2482 = vsub.s32 0, %v2481
    %v2483 = vrot.slane %v1035, %v2482
    %v2485 = vsel %vm82, %v2478, 0
    %v2488 = vsel %vm82, %v2479, 0
    %2490 = vmatprep.subr.mxu0 0.0
    %2491 = vmatpush1.msra.mxu0 %v1023
    %2492 = vmatprep.subr.mxu0 0.0
    %2493 = vmatpush1.msra.mxu0 %v1024
    %2494 = vmatprep.subr.mxu0 0.0
    %2495 = vmatpush1.msra.mxu0 %v1025
    %2496 = vmatprep.subr.mxu0 0.0
    %2497 = vmatpush1.msra.mxu0 %v1026
    %2498 = vmatprep.subr.mxu0 0.0
    %2499 = vmatpush1.msra.mxu0 0.0
    %2500 = vmatprep.subr.mxu0 0.0
    %2501 = vmatpush1.msra.mxu0 0.0
    %2502 = vmatprep.subr.mxu0 0.0
    %2503 = vmatpush1.msra.mxu0 0.0
    %2504 = vmatprep.subr.mxu0 0.0
    %2505 = vmatpush1.msra.mxu0 0.0
    %2506 = vmatprep.subr.mxu0 0.0
    %2507 = vmatpush1.msra.mxu0 0.0
    %2508 = vmatprep.subr.mxu0 0.0
    %2509 = vmatpush1.msra.mxu0 0.0
    %2510 = vmatprep.subr.mxu0 0.0
    %2511 = vmatpush1.msra.mxu0 0.0
    %2512 = vmatprep.subr.mxu0 0.0
    %2513 = vmatpush1.msra.mxu0 0.0
    %2514 = vmatprep.subr.mxu0 0.0
    %2515 = vmatpush1.msra.mxu0 0.0
    %2516 = vmatprep.subr.mxu0 0.0
    %2517 = vmatpush1.msra.mxu0 0.0
    %2518 = vmatprep.subr.mxu0 0.0
    %2519 = vmatpush1.msra.mxu0 0.0
    %2520 = vmatprep.subr.mxu0 0.0
    %2521 = vmatpush1.msra.mxu0 0.0
    %2522 = vmatprep.subr.mxu0 0.0
    %2523 = vmatpush1.msra.mxu0 0.0
    %2524 = vmatprep.subr.mxu0 0.0
    %2525 = vmatpush1.msra.mxu0 0.0
    %2526 = vmatprep.subr.mxu0 0.0
    %2527 = vmatpush1.msra.mxu0 0.0
    %2528 = vmatprep.subr.mxu0 0.0
    %2529 = vmatpush1.msra.mxu0 0.0
    %2530 = vmatprep.subr.mxu0 0.0
    %2531 = vmatpush1.msra.mxu0 0.0
    %2532 = vmatprep.subr.mxu0 0.0
    %2533 = vmatpush1.msra.mxu0 0.0
    %2534 = vmatprep.subr.mxu0 0.0
    %2535 = vmatpush1.msra.mxu0 0.0
    %2536 = vmatprep.subr.mxu0 0.0
    %2537 = vmatpush1.msra.mxu0 0.0
    %2538 = vmatprep.subr.mxu0 0.0
    %2539 = vmatpush1.msra.mxu0 0.0
    %2540 = vmatprep.subr.mxu0 0.0
    %2541 = vmatpush1.msra.mxu0 0.0
    %2542 = vmatprep.subr.mxu0 0.0
    %2543 = vmatpush1.msra.mxu0 0.0
    %2544 = vmatprep.subr.mxu0 0.0
    %2545 = vmatpush1.msra.mxu0 0.0
    %2546 = vmatprep.subr.mxu0 0.0
    %2547 = vmatpush1.msra.mxu0 0.0
    %2548 = vmatprep.subr.mxu0 0.0
    %2549 = vmatpush1.msra.mxu0 0.0
    %2550 = vmatprep.subr.mxu0 0.0
    %2551 = vmatpush1.msra.mxu0 0.0
    %2552 = vmatprep.subr.mxu0 0.0
    %2553 = vmatpush1.msra.mxu0 0.0
    %2554 = vmatprep.mubr.f32.mxu0 0.0
    %2555 = vmatmul.mubr.f32.gmra.mrb[0].mxu0 %v2485
    %v2556 = vpop.f32.mrb[0].mxu0
    %v2557 = vadd.f32 %v2483, %v2556
    %v2558 = vpop.f32.mrb[0].mxu0
    %2559 = vmatprep.mubr.f32.mxu0 0.0
    %2560 = vmatmul.mubr.f32.gmra.mrb[0].mxu0 %v2488
    %v2561 = vpop.f32.mrb[0].mxu0
    %v2562 = vadd.f32 %v2483, %v2561
    %v2563 = vpop.f32.mrb[0].mxu0
    %2564 = vdwg.mxu0
    %v2565 = vadd.f32 %v2557, %v80
    %v2566 = vadd.f32 %v2562, %v81
    %2567 = vst.msk [vmem:[#allocation11] sm:$0xff] %vm82, %v2565
    %2568 = vst.msk [vmem:[#allocation11 + $0x8] sm:$0xff] %vm82, %v2566
    // Predicated region
    $region42: #{tpu_custom_call.1} parent=1 // pred_check
      _
    $region43: #{tpu_custom_call.1} parent=1 // pred_check_branch
      %2570 = sbr.rel (0) target = $region45
    $region44: #{tpu_custom_call.1} parent=1 // pred_region
      %s2572 = ssub.s32 256, 256
      %2573 = vsyncadd [#allocation5], %s2572
      %s2574 = sshll.u32 [#allocation11], 4
      %s2575 = int_to_ptr.vmem [resolvable:$true] %s2574
      %2580 = dma.vmem_to_hbm [thread:$0]  %s2575, 256, %s6, [#allocation5], 128, 128, 8
    $region45: #{tpu_custom_call.1} parent=1 // pred_fallthru
      _
    // Predicated region
    $region46: #{tpu_custom_call.1} parent=1 // pred_check
      _
    $region47: #{tpu_custom_call.1} parent=1 // pred_check_branch
      %2582 = sbr.rel (0) target = $region49
    $region48: #{tpu_custom_call.1} parent=1 // pred_region
      %2583 = dma.done [#allocation5], 256
    $region49: #{tpu_custom_call.1} parent=1 // pred_fallthru
      _
    %2584 = vsyncpa [#allocation4], 1
    %2585 = vsyncpa [#allocation8], 1
    %2586 = vsyncpa [#allocation5], 1
    %2587 = vsyncpa [#allocation6], 1

</llo_original>
